<compile_context>
chip_gen: v5e
topology: v5e:2x2
jax: 0.10.0
libtpu: 0.0.40
codegen_flags: <defaults>
</compile_context>

<pallas_src>
import numpy as np
import jax
import jax.numpy as jnp
from jax import lax
from jax.experimental import pallas as pl
from jax.experimental.pallas import tpu as pltpu


# ----------------------------- Pallas kernel --------------------------------
def _backbone_up_kernel(x_ref, rowm_ref, colm_ref, dwl_ref, pwm_ref, sel_ref, selt_ref,
                        o_ref, p_ref):
    # x_ref    : (1, H, C_in*W)        bf16  one sample, channels packed along lanes
    # rowm_ref : (H2+2, H)             bf16  row interp matrix (zero rows = conv padding)
    # colm_ref : (3, C_in*W, C_in*W2)  bf16  block-diag col interp matrices, one per dx shift
    # dwl_ref  : (9, C_in*W2)          f32   per-lane depthwise weights, index = 3*dy+dx
    # pwm_ref  : (C_in*W2, C_out*W2)   bf16  block-diag pointwise (1x1 conv) matrix
    # sel_ref  : (C_out*W2, C_out)     f32   0/1 selector: sum W2-lane blocks -> per-channel
    # selt_ref : (C_out, C_out*W2)     f32   its transpose: broadcast per-channel -> lanes
    # o_ref    : (1, H2, C_out*W2)     f32   lane-dense output slab
    # p_ref    : (3, H2+2, C_in*W2)    f32   scratch: padded upsample, one buffer per dx shift
    _, H2, CoW2 = o_ref.shape
    CW2 = dwl_ref.shape[1]
    C_out = sel_ref.shape[1]
    W2 = CoW2 // C_out
    inv_count = 1.0 / float(H2 * W2)
    eps = 1e-5

    # ---- bilinear upsample (+ zero pad) fused into matmuls, all channels at once ----
    # Row interpolation: (H2+2, H) @ (H, C_in*W) -> (H2+2, C_in*W), f32 accumulation.
    t = jnp.dot(rowm_ref[...], x_ref[0], preferred_element_type=jnp.float32)
    t_bf = t.astype(jnp.bfloat16)
    # Column interpolation, with the dx shift of the 3x3 window folded into the matrix
    # (removes all lane-crossing window slices).
    for dx in range(3):
        p_ref[dx] = jnp.dot(t_bf, colm_ref[dx], preferred_element_type=jnp.float32)

    # ---- depthwise 3x3: 9 full-lane FMAs; dy handled by sublane-offset reads ----
    acc = jnp.zeros((H2, CW2), jnp.float32)
    for dy in range(3):
        for dx in range(3):
            k = 3 * dy + dx
            acc = acc + dwl_ref[k:k + 1, :] * p_ref[dx, dy:dy + H2, :]

    # ---- pointwise 1x1 conv as a single MXU matmul ----
    y = jnp.dot(acc.astype(jnp.bfloat16), pwm_ref[...],
                preferred_element_type=jnp.float32)          # (H2, C_out*W2), f32

    # ---- InstanceNorm2d (no affine, biased var) + ReLU, stats per W2-lane channel block ----
    rs = jnp.sum(y, axis=0, keepdims=True)                   # (1, C_out*W2)
    rss = jnp.sum(y * y, axis=0, keepdims=True)
    # Tiny selector matmuls (kept exact with HIGHEST; negligible cost at (1,256)x(256,8)).
    csum = jnp.dot(rs, sel_ref[...], preferred_element_type=jnp.float32,
                   precision=lax.Precision.HIGHEST)          # (1, C_out)
    csumsq = jnp.dot(rss, sel_ref[...], preferred_element_type=jnp.float32,
                     precision=lax.Precision.HIGHEST)
    mu = csum * inv_count
    var = csumsq * inv_count - mu * mu
    inv_std = lax.rsqrt(var + eps)                           # EUP
    mu_l = jnp.dot(mu, selt_ref[...], preferred_element_type=jnp.float32,
                   precision=lax.Precision.HIGHEST)          # (1, C_out*W2)
    inv_l = jnp.dot(inv_std, selt_ref[...], preferred_element_type=jnp.float32,
                    precision=lax.Precision.HIGHEST)
    o_ref[0] = jnp.maximum((y - mu_l) * inv_l, 0.0).astype(o_ref.dtype)
    # Note: dropout=0.0 in the reference module, so nn.Dropout is never constructed (no-op here).


# ------------------------------- wrapper -------------------------------------
def backbone_up(x, wh, ww, dw, pw):
    """x: (N, C_in, H, W) f32; wh: (2H, H); ww: (2W, W); dw: (C_in,3,3); pw: (C_out,C_in)."""
    N, C_in, H, W = x.shape
    C_out = pw.shape[0]
    H2, W2 = 2 * H, 2 * W

    # --- layout plumbing (cheap XLA ops outside the kernel) ---
    # NCHW -> (N, H, C_in*W): channels packed along lanes.
    x_flat = jnp.transpose(x, (0, 2, 1, 3)).reshape(N, H, C_in * W)

    # Interp matrices zero-padded by 1 row/col = the 3x3 conv's zero padding.
    whp = jnp.zeros((H2 + 2, H), jnp.float32).at[1:-1].set(wh)
    wwp = jnp.zeros((W2 + 2, W), jnp.float32).at[1:-1].set(ww)

    eye_ci = jnp.eye(C_in, dtype=jnp.float32)
    # Block-diagonal column-interp matrices, one per dx shift: (3, C_in*W, C_in*W2).
    colm = jnp.stack([jnp.kron(eye_ci, wwp[dx:dx + W2, :].T) for dx in range(3)])
    # Per-lane depthwise weights: (9, C_in*W2), channel weight repeated over its W2 lanes.
    dwl = jnp.repeat(dw.reshape(C_in, 9).T, W2, axis=1).astype(jnp.float32)
    # Block-diagonal pointwise matrix: (C_in*W2, C_out*W2).
    pwm = jnp.kron(pw.T, jnp.eye(W2, dtype=jnp.float32))
    # 0/1 selector for per-channel stats and its transpose for lane broadcast.
    sel = jnp.kron(jnp.eye(C_out, dtype=jnp.float32), jnp.ones((W2, 1), jnp.float32))
    selt = sel.T

    out_flat = pl.pallas_call(
        _backbone_up_kernel,
        out_shape=jax.ShapeDtypeStruct((N, H2, C_out * W2), jnp.float32),
        grid_spec=pltpu.PrefetchScalarGridSpec(
            num_scalar_prefetch=0,
            grid=(N,),
            in_specs=[
                pl.BlockSpec((1, H, C_in * W), lambda n: (n, 0, 0)),
                pl.BlockSpec((H2 + 2, H), lambda n: (0, 0)),
                pl.BlockSpec((3, C_in * W, C_in * W2), lambda n: (0, 0, 0)),
                pl.BlockSpec((9, C_in * W2), lambda n: (0, 0)),
                pl.BlockSpec((C_in * W2, C_out * W2), lambda n: (0, 0)),
                pl.BlockSpec((C_out * W2, C_out), lambda n: (0, 0)),
                pl.BlockSpec((C_out, C_out * W2), lambda n: (0, 0)),
            ],
            out_specs=pl.BlockSpec((1, H2, C_out * W2), lambda n: (n, 0, 0)),
            scratch_shapes=[pltpu.VMEM((3, H2 + 2, C_in * W2), jnp.float32)],
        ),
        compiler_params=pltpu.CompilerParams(dimension_semantics=("parallel",)),
    )(x_flat.astype(jnp.bfloat16), whp.astype(jnp.bfloat16), colm.astype(jnp.bfloat16),
      dwl, pwm.astype(jnp.bfloat16), sel, selt)

    # (N, H2, C_out*W2) -> (N, C_out, H2, W2)
    return jnp.transpose(out_flat.reshape(N, H2, C_out, W2), (0, 2, 1, 3))


# ------------------------- parameter / matrix setup --------------------------
def _interp_matrix(n_in, n_out):
    """Bilinear interpolation matrix (n_out, n_in) for align_corners=True."""
    m = np.zeros((n_out, n_in), dtype=np.float32)
    if n_in == 1 or n_out == 1:
        m[:, 0] = 1.0
        return m
    scale = (n_in - 1) / (n_out - 1)
    for o in range(n_out):
        src = o * scale
        i0 = min(int(np.floor(src)), n_in - 1)
        frac = src - i0
        if i0 + 1 < n_in:
            m[o, i0] = 1.0 - frac
            m[o, i0 + 1] = frac
        else:
            m[o, i0] = 1.0
    return m


# ------------------------------ pure-JAX reference ---------------------------
def backbone_up_ref(x, wh, ww, dw, pw):
    up = jnp.einsum('oh,nchw->ncow', wh, x, precision=lax.Precision.HIGHEST)
    up = jnp.einsum('pw,ncow->ncop', ww, up, precision=lax.Precision.HIGHEST)
    C_in = x.shape[1]
    C_out = pw.shape[0]
    y = lax.conv_general_dilated(
        up, dw.reshape(C_in, 1, 3, 3), (1, 1), ((1, 1), (1, 1)),
        dimension_numbers=('NCHW', 'OIHW', 'NCHW'),
        feature_group_count=C_in, precision=lax.Precision.HIGHEST)
    y = lax.conv_general_dilated(
        y, pw.reshape(C_out, C_in, 1, 1), (1, 1), ((0, 0), (0, 0)),
        dimension_numbers=('NCHW', 'OIHW', 'NCHW'),
        precision=lax.Precision.HIGHEST)
    mu = jnp.mean(y, axis=(2, 3), keepdims=True)
    var = jnp.mean((y - mu) ** 2, axis=(2, 3), keepdims=True)
    y = (y - mu) * lax.rsqrt(var + 1e-5)
    return jnp.maximum(y, 0.0)


# ----------------------------------- main ------------------------------------
if __name__ == "__main__":
    N, C_in, C_out, H, W = 2, 4, 8, 16, 16

    key = jax.random.PRNGKey(0)
    kx, kd, kp = jax.random.split(key, 3)
    x = jax.random.normal(kx, (N, C_in, H, W), dtype=jnp.float32)
    # SeparableConv2d(C_in, C_out, 3, 1, 1, bias=False) weights (squeezed)
    dw = 0.3 * jax.random.normal(kd, (C_in, 3, 3), dtype=jnp.float32)   # depthwise (C_in,1,3,3)
    pw = 0.3 * jax.random.normal(kp, (C_out, C_in), dtype=jnp.float32)  # pointwise (C_out,C_in,1,1)

    wh = jnp.asarray(_interp_matrix(H, 2 * H))   # (2H, H) bilinear, align_corners=True
    ww = jnp.asarray(_interp_matrix(W, 2 * W))   # (2W, W)

    out = jax.jit(backbone_up)(x, wh, ww, dw, pw)
    out = jax.block_until_ready(out)
    assert out.shape == (N, C_out, 2 * H, 2 * W)

    ref = backbone_up_ref(x, wh, ww, dw, pw)
    max_err = float(jnp.max(jnp.abs(out - ref)))
    rel_err = float(jnp.linalg.norm(out - ref) / jnp.linalg.norm(ref))
    # bf16 MXU fast path vs f32/HIGHEST reference: expect max-abs err ~1e-2 and rel-L2 ~1e-2;
    # structural/indexing bugs would give O(1) errors on both metrics.
    if max_err > 1e-1 or rel_err > 3e-2:
        raise AssertionError(
            f"Pallas kernel mismatch vs reference: max abs err={max_err}, rel l2 err={rel_err}")

    print("KERNEL_OK")
</pallas_src>

<mosaic_0001>
module attributes {stable_mosaic.version = 11 : i64} {
  func.func @_backbone_up_kernel(%arg0: i32, %arg1: memref<1x16x64xbf16, #tpu.memory_space<vmem>>, %arg2: memref<34x16xbf16, #tpu.memory_space<vmem>>, %arg3: memref<3x64x128xbf16, #tpu.memory_space<vmem>>, %arg4: memref<9x128xf32, #tpu.memory_space<vmem>>, %arg5: memref<128x256xbf16, #tpu.memory_space<vmem>>, %arg6: memref<256x8xf32, #tpu.memory_space<vmem>>, %arg7: memref<8x256xf32, #tpu.memory_space<vmem>>, %arg8: memref<1x32x256xf32, #tpu.memory_space<vmem>>, %arg9: memref<3x34x128xf32, #tpu.memory_space<vmem>>) attributes {dimension_semantics = [#tpu.dimension_semantics<parallel>], iteration_bounds = array<i64: 2>, scalar_prefetch = 0 : i64, scratch_operands = 1 : i64, tpu.core_type = #tpu.core_type<tc>, window_params = [{transform_indices = @transform_0, window_bounds = array<i64: 1, 16, 64>}, {pipeline_mode = #tpu.pipeline_mode<synchronous>, transform_indices = @transform_1, window_bounds = array<i64: 34, 16>}, {pipeline_mode = #tpu.pipeline_mode<synchronous>, transform_indices = @transform_2, window_bounds = array<i64: 3, 64, 128>}, {pipeline_mode = #tpu.pipeline_mode<synchronous>, transform_indices = @transform_3, window_bounds = array<i64: 9, 128>}, {pipeline_mode = #tpu.pipeline_mode<synchronous>, transform_indices = @transform_4, window_bounds = array<i64: 128, 256>}, {pipeline_mode = #tpu.pipeline_mode<synchronous>, transform_indices = @transform_5, window_bounds = array<i64: 256, 8>}, {pipeline_mode = #tpu.pipeline_mode<synchronous>, transform_indices = @transform_6, window_bounds = array<i64: 8, 256>}, {transform_indices = @transform_7, window_bounds = array<i64: 1, 32, 256>}]} {
    %c0 = arith.constant 0 : index
    %c0_0 = arith.constant 0 : index
    %0 = vector.load %arg2[%c0, %c0_0] : memref<34x16xbf16, #tpu.memory_space<vmem>>, vector<34x16xbf16>
    %c0_1 = arith.constant 0 : index
    %c0_2 = arith.constant 0 : index
    %c0_3 = arith.constant 0 : index
    %1 = vector.load %arg1[%c0_1, %c0_2, %c0_3] : memref<1x16x64xbf16, #tpu.memory_space<vmem>>, vector<1x16x64xbf16>
    %2 = vector.shape_cast %1 : vector<1x16x64xbf16> to vector<16x64xbf16>
    %cst = arith.constant dense<0.000000e+00> : vector<34x64xf32>
    %3 = tpu.matmul %0, %2, %cst {dimension_numbers = #tpu.dot_dimension_numbers<[1], [0], [0], [1], [0, 0, 1, 1], [], []>} : vector<34x16xbf16>, vector<16x64xbf16>, vector<34x64xf32> -> vector<34x64xf32>
    %4 = arith.truncf %3 : vector<34x64xf32> to vector<34x64xbf16>
    %c0_4 = arith.constant 0 : index
    %c0_5 = arith.constant 0 : index
    %c0_6 = arith.constant 0 : index
    %5 = vector.load %arg3[%c0_4, %c0_5, %c0_6] : memref<3x64x128xbf16, #tpu.memory_space<vmem>>, vector<1x64x128xbf16>
    %6 = vector.shape_cast %5 : vector<1x64x128xbf16> to vector<64x128xbf16>
    %cst_7 = arith.constant dense<0.000000e+00> : vector<34x128xf32>
    %7 = tpu.matmul %4, %6, %cst_7 {dimension_numbers = #tpu.dot_dimension_numbers<[1], [0], [0], [1], [0, 0, 1, 1], [], []>} : vector<34x64xbf16>, vector<64x128xbf16>, vector<34x128xf32> -> vector<34x128xf32>
    %c0_8 = arith.constant 0 : index
    %c0_9 = arith.constant 0 : index
    %c0_10 = arith.constant 0 : index
    %8 = vector.load %arg9[%c0_8, %c0_9, %c0_10] : memref<3x34x128xf32, #tpu.memory_space<vmem>>, vector<1x34x128xf32>
    %9 = vector.shape_cast %8 : vector<1x34x128xf32> to vector<34x128xf32>
    %10 = vector.shape_cast %7 : vector<34x128xf32> to vector<1x34x128xf32>
    tpu.vector_store %arg9[%c0_8, %c0_9, %c0_10], %10 {strides = array<i32>} : memref<3x34x128xf32, #tpu.memory_space<vmem>>, vector<1x34x128xf32>,
    %c1 = arith.constant 1 : index
    %c0_11 = arith.constant 0 : index
    %c0_12 = arith.constant 0 : index
    %11 = vector.load %arg3[%c1, %c0_11, %c0_12] : memref<3x64x128xbf16, #tpu.memory_space<vmem>>, vector<1x64x128xbf16>
    %12 = vector.shape_cast %11 : vector<1x64x128xbf16> to vector<64x128xbf16>
    %cst_13 = arith.constant dense<0.000000e+00> : vector<34x128xf32>
    %13 = tpu.matmul %4, %12, %cst_13 {dimension_numbers = #tpu.dot_dimension_numbers<[1], [0], [0], [1], [0, 0, 1, 1], [], []>} : vector<34x64xbf16>, vector<64x128xbf16>, vector<34x128xf32> -> vector<34x128xf32>
    %c1_14 = arith.constant 1 : index
    %c0_15 = arith.constant 0 : index
    %c0_16 = arith.constant 0 : index
    %14 = vector.load %arg9[%c1_14, %c0_15, %c0_16] : memref<3x34x128xf32, #tpu.memory_space<vmem>>, vector<1x34x128xf32>
    %15 = vector.shape_cast %14 : vector<1x34x128xf32> to vector<34x128xf32>
    %16 = vector.shape_cast %13 : vector<34x128xf32> to vector<1x34x128xf32>
    tpu.vector_store %arg9[%c1_14, %c0_15, %c0_16], %16 {strides = array<i32>} : memref<3x34x128xf32, #tpu.memory_space<vmem>>, vector<1x34x128xf32>,
    %c2 = arith.constant 2 : index
    %c0_17 = arith.constant 0 : index
    %c0_18 = arith.constant 0 : index
    %17 = vector.load %arg3[%c2, %c0_17, %c0_18] : memref<3x64x128xbf16, #tpu.memory_space<vmem>>, vector<1x64x128xbf16>
    %18 = vector.shape_cast %17 : vector<1x64x128xbf16> to vector<64x128xbf16>
    %cst_19 = arith.constant dense<0.000000e+00> : vector<34x128xf32>
    %19 = tpu.matmul %4, %18, %cst_19 {dimension_numbers = #tpu.dot_dimension_numbers<[1], [0], [0], [1], [0, 0, 1, 1], [], []>} : vector<34x64xbf16>, vector<64x128xbf16>, vector<34x128xf32> -> vector<34x128xf32>
    %c2_20 = arith.constant 2 : index
    %c0_21 = arith.constant 0 : index
    %c0_22 = arith.constant 0 : index
    %20 = vector.load %arg9[%c2_20, %c0_21, %c0_22] : memref<3x34x128xf32, #tpu.memory_space<vmem>>, vector<1x34x128xf32>
    %21 = vector.shape_cast %20 : vector<1x34x128xf32> to vector<34x128xf32>
    %22 = vector.shape_cast %19 : vector<34x128xf32> to vector<1x34x128xf32>
    tpu.vector_store %arg9[%c2_20, %c0_21, %c0_22], %22 {strides = array<i32>} : memref<3x34x128xf32, #tpu.memory_space<vmem>>, vector<1x34x128xf32>,
    %cst_23 = arith.constant 0.000000e+00 : f32
    %23 = vector.broadcast %cst_23 : f32 to vector<32x128xf32>
    %c0_24 = arith.constant 0 : index
    %c0_25 = arith.constant 0 : index
    %24 = vector.load %arg4[%c0_24, %c0_25] : memref<9x128xf32, #tpu.memory_space<vmem>>, vector<1x128xf32>
    %c0_26 = arith.constant 0 : index
    %c0_27 = arith.constant 0 : index
    %c0_28 = arith.constant 0 : index
    %25 = vector.load %arg9[%c0_26, %c0_27, %c0_28] : memref<3x34x128xf32, #tpu.memory_space<vmem>>, vector<1x32x128xf32>
    %26 = vector.shape_cast %25 : vector<1x32x128xf32> to vector<32x128xf32>
    %27 = vector.broadcast %24 : vector<1x128xf32> to vector<32x128xf32>
    %28 = arith.mulf %27, %26 : vector<32x128xf32>
    %29 = arith.addf %23, %28 : vector<32x128xf32>
    %c1_29 = arith.constant 1 : index
    %c0_30 = arith.constant 0 : index
    %30 = vector.load %arg4[%c1_29, %c0_30] : memref<9x128xf32, #tpu.memory_space<vmem>>, vector<1x128xf32>
    %c1_31 = arith.constant 1 : index
    %c0_32 = arith.constant 0 : index
    %c0_33 = arith.constant 0 : index
    %31 = vector.load %arg9[%c1_31, %c0_32, %c0_33] : memref<3x34x128xf32, #tpu.memory_space<vmem>>, vector<1x32x128xf32>
    %32 = vector.shape_cast %31 : vector<1x32x128xf32> to vector<32x128xf32>
    %33 = vector.broadcast %30 : vector<1x128xf32> to vector<32x128xf32>
    %34 = arith.mulf %33, %32 : vector<32x128xf32>
    %35 = arith.addf %29, %34 : vector<32x128xf32>
    %c2_34 = arith.constant 2 : index
    %c0_35 = arith.constant 0 : index
    %36 = vector.load %arg4[%c2_34, %c0_35] : memref<9x128xf32, #tpu.memory_space<vmem>>, vector<1x128xf32>
    %c2_36 = arith.constant 2 : index
    %c0_37 = arith.constant 0 : index
    %c0_38 = arith.constant 0 : index
    %37 = vector.load %arg9[%c2_36, %c0_37, %c0_38] : memref<3x34x128xf32, #tpu.memory_space<vmem>>, vector<1x32x128xf32>
    %38 = vector.shape_cast %37 : vector<1x32x128xf32> to vector<32x128xf32>
    %39 = vector.broadcast %36 : vector<1x128xf32> to vector<32x128xf32>
    %40 = arith.mulf %39, %38 : vector<32x128xf32>
    %41 = arith.addf %35, %40 : vector<32x128xf32>
    %c3 = arith.constant 3 : index
    %c0_39 = arith.constant 0 : index
    %42 = vector.load %arg4[%c3, %c0_39] : memref<9x128xf32, #tpu.memory_space<vmem>>, vector<1x128xf32>
    %c0_40 = arith.constant 0 : index
    %c1_41 = arith.constant 1 : index
    %c0_42 = arith.constant 0 : index
    %43 = vector.load %arg9[%c0_40, %c1_41, %c0_42] : memref<3x34x128xf32, #tpu.memory_space<vmem>>, vector<1x32x128xf32>
    %44 = vector.shape_cast %43 : vector<1x32x128xf32> to vector<32x128xf32>
    %45 = vector.broadcast %42 : vector<1x128xf32> to vector<32x128xf32>
    %46 = arith.mulf %45, %44 : vector<32x128xf32>
    %47 = arith.addf %41, %46 : vector<32x128xf32>
    %c4 = arith.constant 4 : index
    %c0_43 = arith.constant 0 : index
    %48 = vector.load %arg4[%c4, %c0_43] : memref<9x128xf32, #tpu.memory_space<vmem>>, vector<1x128xf32>
    %c1_44 = arith.constant 1 : index
    %c1_45 = arith.constant 1 : index
    %c0_46 = arith.constant 0 : index
    %49 = vector.load %arg9[%c1_44, %c1_45, %c0_46] : memref<3x34x128xf32, #tpu.memory_space<vmem>>, vector<1x32x128xf32>
    %50 = vector.shape_cast %49 : vector<1x32x128xf32> to vector<32x128xf32>
    %51 = vector.broadcast %48 : vector<1x128xf32> to vector<32x128xf32>
    %52 = arith.mulf %51, %50 : vector<32x128xf32>
    %53 = arith.addf %47, %52 : vector<32x128xf32>
    %c5 = arith.constant 5 : index
    %c0_47 = arith.constant 0 : index
    %54 = vector.load %arg4[%c5, %c0_47] : memref<9x128xf32, #tpu.memory_space<vmem>>, vector<1x128xf32>
    %c2_48 = arith.constant 2 : index
    %c1_49 = arith.constant 1 : index
    %c0_50 = arith.constant 0 : index
    %55 = vector.load %arg9[%c2_48, %c1_49, %c0_50] : memref<3x34x128xf32, #tpu.memory_space<vmem>>, vector<1x32x128xf32>
    %56 = vector.shape_cast %55 : vector<1x32x128xf32> to vector<32x128xf32>
    %57 = vector.broadcast %54 : vector<1x128xf32> to vector<32x128xf32>
    %58 = arith.mulf %57, %56 : vector<32x128xf32>
    %59 = arith.addf %53, %58 : vector<32x128xf32>
    %c6 = arith.constant 6 : index
    %c0_51 = arith.constant 0 : index
    %60 = vector.load %arg4[%c6, %c0_51] : memref<9x128xf32, #tpu.memory_space<vmem>>, vector<1x128xf32>
    %c0_52 = arith.constant 0 : index
    %c2_53 = arith.constant 2 : index
    %c0_54 = arith.constant 0 : index
    %61 = vector.load %arg9[%c0_52, %c2_53, %c0_54] : memref<3x34x128xf32, #tpu.memory_space<vmem>>, vector<1x32x128xf32>
    %62 = vector.shape_cast %61 : vector<1x32x128xf32> to vector<32x128xf32>
    %63 = vector.broadcast %60 : vector<1x128xf32> to vector<32x128xf32>
    %64 = arith.mulf %63, %62 : vector<32x128xf32>
    %65 = arith.addf %59, %64 : vector<32x128xf32>
    %c7 = arith.constant 7 : index
    %c0_55 = arith.constant 0 : index
    %66 = vector.load %arg4[%c7, %c0_55] : memref<9x128xf32, #tpu.memory_space<vmem>>, vector<1x128xf32>
    %c1_56 = arith.constant 1 : index
    %c2_57 = arith.constant 2 : index
    %c0_58 = arith.constant 0 : index
    %67 = vector.load %arg9[%c1_56, %c2_57, %c0_58] : memref<3x34x128xf32, #tpu.memory_space<vmem>>, vector<1x32x128xf32>
    %68 = vector.shape_cast %67 : vector<1x32x128xf32> to vector<32x128xf32>
    %69 = vector.broadcast %66 : vector<1x128xf32> to vector<32x128xf32>
    %70 = arith.mulf %69, %68 : vector<32x128xf32>
    %71 = arith.addf %65, %70 : vector<32x128xf32>
    %c8 = arith.constant 8 : index
    %c0_59 = arith.constant 0 : index
    %72 = vector.load %arg4[%c8, %c0_59] : memref<9x128xf32, #tpu.memory_space<vmem>>, vector<1x128xf32>
    %c2_60 = arith.constant 2 : index
    %c2_61 = arith.constant 2 : index
    %c0_62 = arith.constant 0 : index
    %73 = vector.load %arg9[%c2_60, %c2_61, %c0_62] : memref<3x34x128xf32, #tpu.memory_space<vmem>>, vector<1x32x128xf32>
    %74 = vector.shape_cast %73 : vector<1x32x128xf32> to vector<32x128xf32>
    %75 = vector.broadcast %72 : vector<1x128xf32> to vector<32x128xf32>
    %76 = arith.mulf %75, %74 : vector<32x128xf32>
    %77 = arith.addf %71, %76 : vector<32x128xf32>
    %78 = arith.truncf %77 : vector<32x128xf32> to vector<32x128xbf16>
    %c0_63 = arith.constant 0 : index
    %c0_64 = arith.constant 0 : index
    %79 = vector.load %arg5[%c0_63, %c0_64] : memref<128x256xbf16, #tpu.memory_space<vmem>>, vector<128x256xbf16>
    %cst_65 = arith.constant dense<0.000000e+00> : vector<32x256xf32>
    %80 = tpu.matmul %78, %79, %cst_65 {dimension_numbers = #tpu.dot_dimension_numbers<[1], [0], [0], [1], [0, 0, 1, 1], [], []>} : vector<32x128xbf16>, vector<128x256xbf16>, vector<32x256xf32> -> vector<32x256xf32>
    %cst_66 = arith.constant dense<0.000000e+00> : vector<256xf32>
    %81 = vector.multi_reduction <add>, %80, %cst_66 [0] : vector<32x256xf32> to vector<256xf32>
    %82 = vector.shape_cast %81 : vector<256xf32> to vector<1x256xf32>
    %83 = arith.mulf %80, %80 : vector<32x256xf32>
    %cst_67 = arith.constant dense<0.000000e+00> : vector<256xf32>
    %84 = vector.multi_reduction <add>, %83, %cst_67 [0] : vector<32x256xf32> to vector<256xf32>
    %85 = vector.shape_cast %84 : vector<256xf32> to vector<1x256xf32>
    %c0_68 = arith.constant 0 : index
    %c0_69 = arith.constant 0 : index
    %86 = vector.load %arg6[%c0_68, %c0_69] : memref<256x8xf32, #tpu.memory_space<vmem>>, vector<256x8xf32>
    %cst_70 = arith.constant dense<0.000000e+00> : vector<1x8xf32>
    %87 = tpu.matmul %82, %86, %cst_70 {dimension_numbers = #tpu.dot_dimension_numbers<[1], [0], [0], [1], [0, 0, 1, 1], [], []>, precision = #tpu.contract_precision<fp32>} : vector<1x256xf32>, vector<256x8xf32>, vector<1x8xf32> -> vector<1x8xf32>
    %c0_71 = arith.constant 0 : index
    %c0_72 = arith.constant 0 : index
    %88 = vector.load %arg6[%c0_71, %c0_72] : memref<256x8xf32, #tpu.memory_space<vmem>>, vector<256x8xf32>
    %cst_73 = arith.constant dense<0.000000e+00> : vector<1x8xf32>
    %89 = tpu.matmul %85, %88, %cst_73 {dimension_numbers = #tpu.dot_dimension_numbers<[1], [0], [0], [1], [0, 0, 1, 1], [], []>, precision = #tpu.contract_precision<fp32>} : vector<1x256xf32>, vector<256x8xf32>, vector<1x8xf32> -> vector<1x8xf32>
    %cst_74 = arith.constant 9.765625E-4 : f32
    %90 = vector.broadcast %cst_74 : f32 to vector<1x8xf32>
    %91 = arith.mulf %87, %90 : vector<1x8xf32>
    %cst_75 = arith.constant 9.765625E-4 : f32
    %92 = vector.broadcast %cst_75 : f32 to vector<1x8xf32>
    %93 = arith.mulf %89, %92 : vector<1x8xf32>
    %94 = arith.mulf %91, %91 : vector<1x8xf32>
    %95 = arith.subf %93, %94 : vector<1x8xf32>
    %cst_76 = arith.constant 9.99999974E-6 : f32
    %96 = vector.broadcast %cst_76 : f32 to vector<1x8xf32>
    %97 = arith.addf %95, %96 : vector<1x8xf32>
    %98 = math.rsqrt %97 : vector<1x8xf32>
    %c0_77 = arith.constant 0 : index
    %c0_78 = arith.constant 0 : index
    %99 = vector.load %arg7[%c0_77, %c0_78] : memref<8x256xf32, #tpu.memory_space<vmem>>, vector<8x256xf32>
    %cst_79 = arith.constant dense<0.000000e+00> : vector<1x256xf32>
    %100 = tpu.matmul %91, %99, %cst_79 {dimension_numbers = #tpu.dot_dimension_numbers<[1], [0], [0], [1], [0, 0, 1, 1], [], []>, precision = #tpu.contract_precision<fp32>} : vector<1x8xf32>, vector<8x256xf32>, vector<1x256xf32> -> vector<1x256xf32>
    %c0_80 = arith.constant 0 : index
    %c0_81 = arith.constant 0 : index
    %101 = vector.load %arg7[%c0_80, %c0_81] : memref<8x256xf32, #tpu.memory_space<vmem>>, vector<8x256xf32>
    %cst_82 = arith.constant dense<0.000000e+00> : vector<1x256xf32>
    %102 = tpu.matmul %98, %101, %cst_82 {dimension_numbers = #tpu.dot_dimension_numbers<[1], [0], [0], [1], [0, 0, 1, 1], [], []>, precision = #tpu.contract_precision<fp32>} : vector<1x8xf32>, vector<8x256xf32>, vector<1x256xf32> -> vector<1x256xf32>
    %103 = vector.broadcast %100 : vector<1x256xf32> to vector<32x256xf32>
    %104 = arith.subf %80, %103 : vector<32x256xf32>
    %105 = vector.broadcast %102 : vector<1x256xf32> to vector<32x256xf32>
    %106 = arith.mulf %104, %105 : vector<32x256xf32>
    %cst_83 = arith.constant 0.000000e+00 : f32
    %107 = vector.broadcast %cst_83 : f32 to vector<32x256xf32>
    %108 = arith.maximumf %106, %107 : vector<32x256xf32>
    %c0_84 = arith.constant 0 : index
    %c0_85 = arith.constant 0 : index
    %c0_86 = arith.constant 0 : index
    %109 = vector.load %arg8[%c0_84, %c0_85, %c0_86] : memref<1x32x256xf32, #tpu.memory_space<vmem>>, vector<1x32x256xf32>
    %110 = vector.shape_cast %109 : vector<1x32x256xf32> to vector<32x256xf32>
    %111 = vector.shape_cast %108 : vector<32x256xf32> to vector<1x32x256xf32>
    tpu.vector_store %arg8[%c0_84, %c0_85, %c0_86], %111 {strides = array<i32>} : memref<1x32x256xf32, #tpu.memory_space<vmem>>, vector<1x32x256xf32>,
    return
  }
  func.func @transform_0(%arg0: i32) -> (i32, i32, i32) {
    %c0_i32 = arith.constant 0 : i32
    %c0_i32_0 = arith.constant 0 : i32
    %c0_i32_1 = arith.constant 0 : i32
    return %arg0, %c0_i32, %c0_i32_0 : i32, i32, i32
  }
  func.func @transform_1(%arg0: i32) -> (i32, i32) {
    %c0_i32 = arith.constant 0 : i32
    %c0_i32_0 = arith.constant 0 : i32
    %c0_i32_1 = arith.constant 0 : i32
    return %c0_i32, %c0_i32_0 : i32, i32
  }
  func.func @transform_2(%arg0: i32) -> (i32, i32, i32) {
    %c0_i32 = arith.constant 0 : i32
    %c0_i32_0 = arith.constant 0 : i32
    %c0_i32_1 = arith.constant 0 : i32
    %c0_i32_2 = arith.constant 0 : i32
    return %c0_i32, %c0_i32_0, %c0_i32_1 : i32, i32, i32
  }
  func.func @transform_3(%arg0: i32) -> (i32, i32) {
    %c0_i32 = arith.constant 0 : i32
    %c0_i32_0 = arith.constant 0 : i32
    %c0_i32_1 = arith.constant 0 : i32
    return %c0_i32, %c0_i32_0 : i32, i32
  }
  func.func @transform_4(%arg0: i32) -> (i32, i32) {
    %c0_i32 = arith.constant 0 : i32
    %c0_i32_0 = arith.constant 0 : i32
    %c0_i32_1 = arith.constant 0 : i32
    return %c0_i32, %c0_i32_0 : i32, i32
  }
  func.func @transform_5(%arg0: i32) -> (i32, i32) {
    %c0_i32 = arith.constant 0 : i32
    %c0_i32_0 = arith.constant 0 : i32
    %c0_i32_1 = arith.constant 0 : i32
    return %c0_i32, %c0_i32_0 : i32, i32
  }
  func.func @transform_6(%arg0: i32) -> (i32, i32) {
    %c0_i32 = arith.constant 0 : i32
    %c0_i32_0 = arith.constant 0 : i32
    %c0_i32_1 = arith.constant 0 : i32
    return %c0_i32, %c0_i32_0 : i32, i32
  }
  func.func @transform_7(%arg0: i32) -> (i32, i32, i32) {
    %c0_i32 = arith.constant 0 : i32
    %c0_i32_0 = arith.constant 0 : i32
    %c0_i32_1 = arith.constant 0 : i32
    return %arg0, %c0_i32, %c0_i32_0 : i32, i32, i32
  }
}

</mosaic_0001>

<llo_original>
// kernel: backbone_up.1
$region0: #{backbone_up.1}
  #allocation0 [shape = 'u32[]', space=smem, size = 0x4, offset = 0x4, fixed_abs, tag = 'smem constant byte address 0x4 - core index']
  #allocation1 [shape = 'u32[72,128]{1,0:T(1,128)}', space=vmem, size = 0x9000, scoped, tag = 'internal scratch']
  #allocation2 [shape = 'f32[3,34,128]{2,1,0:T(8,128)}', space=vmem, size = 0xf000, scoped, tag = 'scratch operand']
  %s0 = inlined_call_operand.vmem [shape: bf16[2,16,64], index: 0, kind: input, shape index: {}]
  %s1 = inlined_call_operand.vmem [shape: bf16[34,16], index: 1, kind: input, shape index: {}]
  %s2 = inlined_call_operand.vmem [shape: bf16[3,64,128], index: 2, kind: input, shape index: {}]
  %s3 = inlined_call_operand.vmem [shape: f32[9,128], index: 3, kind: input, shape index: {}]
  %s4 = inlined_call_operand.vmem [shape: bf16[128,256], index: 4, kind: input, shape index: {}]
  %s5 = inlined_call_operand.vmem [shape: f32[256,8], index: 5, kind: input, shape index: {}]
  %s6 = inlined_call_operand.vmem [shape: f32[8,256], index: 6, kind: input, shape index: {}]
  %s7 = inlined_call_operand.vmem [shape: f32[2,32,256], index: 7, kind: output, shape index: {}]
  %s8 = sld [smem:[#allocation0]]
  $region61: #{backbone_up.1} parent=0
    _
  %s10 = ssub.s32 1, %s8
  %s11 = scalar_select 0, %s10, %s8
  loop: start=0, step=1, limit=4
  $region2: #{backbone_up.1} parent=0 // loop_pre_header
    _
  $region3: #{backbone_up.1} parent=0 // loop_header
    %s13 = sphi 0, %s17
    %p14 = scmp.ge.s32.totalorder %s13, 4
    %s23 = sphi 0, %s25
    %s26 = sphi 0, %s23
    %s27 = sphi 0, %s26
    %s43 = sphi 0, %s27
    %s47 = sphi 0, %s47
    %s49 = sphi 0, %s47
    %s50 = sphi 0, %s49
    %s64 = sphi 0, %s50
    %s68 = sphi 0, %s68
    %s70 = sphi 0, %s68
    %s71 = sphi 0, %s70
    %s85 = sphi 0, %s71
    %s89 = sphi 0, %s89
    %s91 = sphi 0, %s89
    %s92 = sphi 0, %s91
    %s106 = sphi 0, %s92
    %s110 = sphi 0, %s110
    %s112 = sphi 0, %s110
    %s113 = sphi 0, %s112
    %s127 = sphi 0, %s113
    %s131 = sphi 0, %s131
    %s133 = sphi 0, %s131
    %s134 = sphi 0, %s133
    %s148 = sphi 0, %s134
    %s152 = sphi 0, %s152
    %s154 = sphi 0, %s152
    %s155 = sphi 0, %s154
    %s169 = sphi 0, %s155
    %s175 = sphi 0, %s177
    %s178 = sphi 0, %s175
    %s179 = sphi 0, %s178
    %s195 = sphi 0, %s179
  $region4: #{backbone_up.1} parent=0 // loop_header_branch
    %16 = sbr.rel (%p14) target = $region8
  $region5: #{backbone_up.1} parent=0 // loop_body
    %s18 = ssub.s32 %s13, 1
    %s19 = ssub.s32 %s13, 2
    %s20 = sadd.s32 %s13, 1
    %s21 = ssub.s32 %s13, %s20
    %p22 = scmp.eq.s32.totalorder %s21, 0
    %s24 = sadd.s32 %s23, 1
    %s25 = scalar_select %p22, %s23, %s24
    %p28 = pneg %p22
    %p29 = scmp.eq.s32.totalorder %s13, 1
    %p30 = por %p28, %p29
    %p31 = scmp.ne.s32.totalorder %s23, %s26
    %p32 = scmp.eq.s32.totalorder %s13, 0
    %p33 = por %p31, %p32
    %p34 = scmp.ne.s32.totalorder %s23, %s26
    %p35 = scmp.eq.s32.totalorder %s18, 1
    %p36 = por %p34, %p35
    %p37 = scmp.ne.s32.totalorder %s26, %s27
    %p38 = scmp.eq.s32.totalorder %s18, 0
    %p39 = por %p37, %p38
    %p40 = scmp.ne.s32.totalorder %s26, %s27
    %p41 = scmp.eq.s32.totalorder %s19, 1
    %p42 = por %p40, %p41
    %p44 = scmp.ne.s32.totalorder %s27, %s43
    %p45 = scmp.eq.s32.totalorder %s19, 0
    %p46 = por %p44, %p45
    %s48 = sadd.s32 %s47, 1
    %p51 = scmp.eq.s32.totalorder %s13, 1
    %p52 = scmp.ne.s32.totalorder %s47, %s49
    %p53 = scmp.eq.s32.totalorder %s13, 0
    %p54 = por %p52, %p53
    %p55 = scmp.ne.s32.totalorder %s47, %s49
    %p56 = scmp.eq.s32.totalorder %s18, 1
    %p57 = por %p55, %p56
    %p58 = scmp.ne.s32.totalorder %s49, %s50
    %p59 = scmp.eq.s32.totalorder %s18, 0
    %p60 = por %p58, %p59
    %p61 = scmp.ne.s32.totalorder %s49, %s50
    %p62 = scmp.eq.s32.totalorder %s19, 1
    %p63 = por %p61, %p62
    %p65 = scmp.ne.s32.totalorder %s50, %s64
    %p66 = scmp.eq.s32.totalorder %s19, 0
    %p67 = por %p65, %p66
    %s69 = sadd.s32 %s68, 1
    %p72 = scmp.eq.s32.totalorder %s13, 1
    %p73 = scmp.ne.s32.totalorder %s68, %s70
    %p74 = scmp.eq.s32.totalorder %s13, 0
    %p75 = por %p73, %p74
    %p76 = scmp.ne.s32.totalorder %s68, %s70
    %p77 = scmp.eq.s32.totalorder %s18, 1
    %p78 = por %p76, %p77
    %p79 = scmp.ne.s32.totalorder %s70, %s71
    %p80 = scmp.eq.s32.totalorder %s18, 0
    %p81 = por %p79, %p80
    %p82 = scmp.ne.s32.totalorder %s70, %s71
    %p83 = scmp.eq.s32.totalorder %s19, 1
    %p84 = por %p82, %p83
    %p86 = scmp.ne.s32.totalorder %s71, %s85
    %p87 = scmp.eq.s32.totalorder %s19, 0
    %p88 = por %p86, %p87
    %s90 = sadd.s32 %s89, 1
    %p93 = scmp.eq.s32.totalorder %s13, 1
    %p94 = scmp.ne.s32.totalorder %s89, %s91
    %p95 = scmp.eq.s32.totalorder %s13, 0
    %p96 = por %p94, %p95
    %p97 = scmp.ne.s32.totalorder %s89, %s91
    %p98 = scmp.eq.s32.totalorder %s18, 1
    %p99 = por %p97, %p98
    %p100 = scmp.ne.s32.totalorder %s91, %s92
    %p101 = scmp.eq.s32.totalorder %s18, 0
    %p102 = por %p100, %p101
    %p103 = scmp.ne.s32.totalorder %s91, %s92
    %p104 = scmp.eq.s32.totalorder %s19, 1
    %p105 = por %p103, %p104
    %p107 = scmp.ne.s32.totalorder %s92, %s106
    %p108 = scmp.eq.s32.totalorder %s19, 0
    %p109 = por %p107, %p108
    %s111 = sadd.s32 %s110, 1
    %p114 = scmp.eq.s32.totalorder %s13, 1
    %p115 = scmp.ne.s32.totalorder %s110, %s112
    %p116 = scmp.eq.s32.totalorder %s13, 0
    %p117 = por %p115, %p116
    %p118 = scmp.ne.s32.totalorder %s110, %s112
    %p119 = scmp.eq.s32.totalorder %s18, 1
    %p120 = por %p118, %p119
    %p121 = scmp.ne.s32.totalorder %s112, %s113
    %p122 = scmp.eq.s32.totalorder %s18, 0
    %p123 = por %p121, %p122
    %p124 = scmp.ne.s32.totalorder %s112, %s113
    %p125 = scmp.eq.s32.totalorder %s19, 1
    %p126 = por %p124, %p125
    %p128 = scmp.ne.s32.totalorder %s113, %s127
    %p129 = scmp.eq.s32.totalorder %s19, 0
    %p130 = por %p128, %p129
    %s132 = sadd.s32 %s131, 1
    %p135 = scmp.eq.s32.totalorder %s13, 1
    %p136 = scmp.ne.s32.totalorder %s131, %s133
    %p137 = scmp.eq.s32.totalorder %s13, 0
    %p138 = por %p136, %p137
    %p139 = scmp.ne.s32.totalorder %s131, %s133
    %p140 = scmp.eq.s32.totalorder %s18, 1
    %p141 = por %p139, %p140
    %p142 = scmp.ne.s32.totalorder %s133, %s134
    %p143 = scmp.eq.s32.totalorder %s18, 0
    %p144 = por %p142, %p143
    %p145 = scmp.ne.s32.totalorder %s133, %s134
    %p146 = scmp.eq.s32.totalorder %s19, 1
    %p147 = por %p145, %p146
    %p149 = scmp.ne.s32.totalorder %s134, %s148
    %p150 = scmp.eq.s32.totalorder %s19, 0
    %p151 = por %p149, %p150
    %s153 = sadd.s32 %s152, 1
    %p156 = scmp.eq.s32.totalorder %s13, 1
    %p157 = scmp.ne.s32.totalorder %s152, %s154
    %p158 = scmp.eq.s32.totalorder %s13, 0
    %p159 = por %p157, %p158
    %p160 = scmp.ne.s32.totalorder %s152, %s154
    %p161 = scmp.eq.s32.totalorder %s18, 1
    %p162 = por %p160, %p161
    %p163 = scmp.ne.s32.totalorder %s154, %s155
    %p164 = scmp.eq.s32.totalorder %s18, 0
    %p165 = por %p163, %p164
    %p166 = scmp.ne.s32.totalorder %s154, %s155
    %p167 = scmp.eq.s32.totalorder %s19, 1
    %p168 = por %p166, %p167
    %p170 = scmp.ne.s32.totalorder %s155, %s169
    %p171 = scmp.eq.s32.totalorder %s19, 0
    %p172 = por %p170, %p171
    %s173 = ssub.s32 %s13, %s20
    %p174 = scmp.eq.s32.totalorder %s173, 0
    %s176 = sadd.s32 %s175, 1
    %s177 = scalar_select %p174, %s175, %s176
    %p180 = pneg %p174
    %p181 = scmp.eq.s32.totalorder %s13, 1
    %p182 = por %p180, %p181
    %p183 = scmp.ne.s32.totalorder %s175, %s178
    %p184 = scmp.eq.s32.totalorder %s13, 0
    %p185 = por %p183, %p184
    %p186 = scmp.ne.s32.totalorder %s175, %s178
    %p187 = scmp.eq.s32.totalorder %s18, 1
    %p188 = por %p186, %p187
    %p189 = scmp.ne.s32.totalorder %s178, %s179
    %p190 = scmp.eq.s32.totalorder %s18, 0
    %p191 = por %p189, %p190
    %p192 = scmp.ne.s32.totalorder %s178, %s179
    %p193 = scmp.eq.s32.totalorder %s19, 1
    %p194 = por %p192, %p193
    %p196 = scmp.ne.s32.totalorder %s179, %s195
    %p197 = scmp.eq.s32.totalorder %s19, 0
    %p198 = por %p196, %p197
    %p199 = scmp.le.s32.totalorder 1, %s13
    %p200 = scmp.lt.s32.totalorder %s13, 3
    %p201 = pnand %p199, %p200
    %p202 = pneg %p201
    // Predicated region
    $region9: #{backbone_up.1} parent=5 // pred_check
      _
    $region10: #{backbone_up.1} parent=5 // pred_check_branch
      %204 = sbr.rel (%p201) target = $region12
    $region11: #{backbone_up.1} parent=5 // pred_region
      %s205 = ssub.s32 %s13, 1
      // Predicated region
      $region13: #{backbone_up.1} parent=11 // pred_check
        %p206 = pneg %p60
      $region14: #{backbone_up.1} parent=11 // pred_check_branch
        %208 = sbr.rel (%p206) target = $region16
      $region15: #{backbone_up.1} parent=11 // pred_region
        _
      $region16: #{backbone_up.1} parent=11 // pred_fallthru
        _
      // Predicated region
      $region17: #{backbone_up.1} parent=11 // pred_check
        %p209 = pneg %p81
      $region18: #{backbone_up.1} parent=11 // pred_check_branch
        %211 = sbr.rel (%p209) target = $region20
      $region19: #{backbone_up.1} parent=11 // pred_region
        _
      $region20: #{backbone_up.1} parent=11 // pred_fallthru
        _
      // Predicated region
      $region21: #{backbone_up.1} parent=11 // pred_check
        %p212 = pneg %p102
      $region22: #{backbone_up.1} parent=11 // pred_check_branch
        %214 = sbr.rel (%p212) target = $region24
      $region23: #{backbone_up.1} parent=11 // pred_region
        _
      $region24: #{backbone_up.1} parent=11 // pred_fallthru
        _
      // Predicated region
      $region25: #{backbone_up.1} parent=11 // pred_check
        %p215 = pneg %p123
      $region26: #{backbone_up.1} parent=11 // pred_check_branch
        %217 = sbr.rel (%p215) target = $region28
      $region27: #{backbone_up.1} parent=11 // pred_region
        _
      $region28: #{backbone_up.1} parent=11 // pred_fallthru
        _
      // Predicated region
      $region29: #{backbone_up.1} parent=11 // pred_check
        %p218 = pneg %p144
      $region30: #{backbone_up.1} parent=11 // pred_check_branch
        %220 = sbr.rel (%p218) target = $region32
      $region31: #{backbone_up.1} parent=11 // pred_region
        _
      $region32: #{backbone_up.1} parent=11 // pred_fallthru
        _
      // Predicated region
      $region33: #{backbone_up.1} parent=11 // pred_check
        %p221 = pneg %p165
      $region34: #{backbone_up.1} parent=11 // pred_check_branch
        %223 = sbr.rel (%p221) target = $region36
      $region35: #{backbone_up.1} parent=11 // pred_region
        _
      $region36: #{backbone_up.1} parent=11 // pred_fallthru
        _
    $region12: #{backbone_up.1} parent=5 // pred_fallthru
      _
    %p224 = scmp.lt.s32.totalorder %s13, 2
    // Predicated region
    $region37: #{backbone_up.1} parent=5 // pred_check
      %p225 = pneg %p224
    $region38: #{backbone_up.1} parent=5 // pred_check_branch
      %227 = sbr.rel (%p225) target = $region40
    $region39: #{backbone_up.1} parent=5 // pred_region
      // Predicated region
      $region41: #{backbone_up.1} parent=39 // pred_check
        %p228 = pneg %p33
      $region42: #{backbone_up.1} parent=39 // pred_check_branch
        %230 = sbr.rel (%p228) target = $region44
      $region43: #{backbone_up.1} parent=39 // pred_region
        %p231 = scmp.lt.s32.totalorder %s13, 1
        %s232 = scalar_select %p231, %s13, 1
        %s233 = smul.addr %s232, 2
        %s234 = smul.addr %s233, 4
        %s235 = scalar_lea.vmem %s0, %s234
      $region44: #{backbone_up.1} parent=39 // pred_fallthru
        _
    $region40: #{backbone_up.1} parent=5 // pred_fallthru
      _
    %p236 = scmp.le.s32.totalorder 1, %s13
    %p237 = scmp.lt.s32.totalorder %s13, 3
    %p238 = pnand %p236, %p237
    %p239 = pneg %p238
    // Predicated region
    $region45: #{backbone_up.1} parent=5 // pred_check
      _
    $region46: #{backbone_up.1} parent=5 // pred_check_branch
      %241 = sbr.rel (%p238) target = $region48
    $region47: #{backbone_up.1} parent=5 // pred_region
      %s242 = ssub.s32 %s13, 1
      %p243 = scmp.lt.s32.totalorder %s18, 1
      %s244 = scalar_select %p243, %s18, 1
      %s245 = smul.addr %s244, 2
      %s246 = smul.addr %s245, 4
      %s247 = scalar_lea.vmem %s0, %s246
      %p248 = pneg %p39
      %p249 = pneg %p36
      %p250 = pneg %p60
      %p251 = pneg %p57
      %p252 = pneg %p81
      %p253 = pneg %p78
      %p254 = pneg %p102
      %p255 = pneg %p99
      %p256 = pneg %p123
      %p257 = pneg %p120
      %p258 = pneg %p144
      %p259 = pneg %p141
      %p260 = pneg %p165
      %p261 = pneg %p162
      %p262 = pneg %p191
      %p263 = pneg %p188
      %p264 = scmp.lt.s32.totalorder %s18, 1
      %s265 = scalar_select %p264, %s18, 1
      %s266 = smul.addr %s265, 8
      %s267 = smul.addr %s266, 8
      %s268 = scalar_lea.vmem %s7, %s267
      %p269 = scmp.lt.s32.totalorder %s18, 1
      %s270 = scalar_select %p269, %s18, 1
      %s271 = smul.addr %s270, 2
      %s272 = smul.addr %s271, 4
      %s273 = scalar_lea.vmem %s0, %s272
      %p274 = scmp.lt.s32.totalorder %s18, 1
      %s275 = scalar_select %p274, %s18, 1
      %s276 = smul.addr %s275, 8
      %s277 = smul.addr %s276, 8
      %s278 = scalar_lea.vmem %s7, %s277
      %v280 = vld [vmem:[%s1] sm:$0xf]
      %v281 = vld [vmem:[%s1 + $0x4] sm:$0xf]
      %v282 = vld [vmem:[%s1 + $0x8] sm:$0xf]
      %v283 = vld [vmem:[%s1 + $0xc] sm:$0xf]
      %v284 = vld [vmem:[%s1 + $0x10] sm:$0x1]
      %v285 = vld [vmem:[%s273] sm:$0xf]
      %v286 = vld [vmem:[%s273 + $0x4] sm:$0xf]
      %v292 = vunpack.c.l.b16 %v280
      %v293 = vunpack.c.l.b16 %v281
      %v294 = vunpack.c.l.b16 %v282
      %v295 = vunpack.c.l.b16 %v283
      %v296 = vunpack.c.l.b16 %v284
      %v297 = vpack.c.b16 %v293, %v292
      %v298 = vpack.c.b16 %v295, %v294
      %v299 = vpack.c.b16 %v296, %v296
      %v302 = vunpack.c.l.b16 %v285
      %v303 = vunpack.c.l.b16 %v286
      %v304 = vpack.c.b16 %v303, %v302
      %vm306 = vcmask 130048
      %v308 = vsel %vm306, %v297, 0
      %v311 = vsel %vm306, %v298, 0
      %v314 = vsel %vm306, %v299, 0
      %316 = vmatpush.bf16.msra.mxu0 0
      %317 = vmatpush.bf16.msra.mxu0 0
      %318 = vmatpush.bf16.msra.mxu0 0
      %319 = vmatpush.bf16.msra.mxu0 0
      %320 = vmatpush.bf16.msra.mxu0 0
      %321 = vmatpush.bf16.msra.mxu0 0
      %322 = vmatpush.bf16.msra.mxu0 0
      %323 = vmatpush.bf16.msra.mxu0 %v304
      %324 = vmatmul.bf16.gmra.mxu0 %v308
      %v325 = vpop.f32.mrf.mxu0
      %v326 = vadd.f32 0.0, %v325
      %v327 = vpop.f32.mrf.mxu0
      %v328 = vadd.f32 0.0, %v327
      %329 = vmatmul.bf16.gmra.mxu0 %v311
      %v330 = vpop.f32.mrf.mxu0
      %v331 = vadd.f32 0.0, %v330
      %v332 = vpop.f32.mrf.mxu0
      %v333 = vadd.f32 0.0, %v332
      %334 = vmatmul.bf16.gmra.mxu0 %v314
      %v335 = vpop.f32.mrf.mxu0
      %v336 = vadd.f32 0.0, %v335
      %v337 = vpop.f32.mrf.mxu0
      %338 = vdwg.mxu0
      %v339 = vpack.c.bf16 %v328, %v326
      %v340 = vpack.c.bf16 %v333, %v331
      %v341 = vpack.c.bf16 %v336, %v336
      %v342 = vld [vmem:[%s2] sm:$0xf]
      %v343 = vld [vmem:[%s2 + $0x4] sm:$0xf]
      %v344 = vld [vmem:[%s2 + $0x8] sm:$0xf]
      %v345 = vld [vmem:[%s2 + $0xc] sm:$0xf]
      %v346 = vld [vmem:[%s2 + $0x10] sm:$0xf]
      %v347 = vld [vmem:[%s2 + $0x14] sm:$0xf]
      %v348 = vld [vmem:[%s2 + $0x18] sm:$0xf]
      %v349 = vld [vmem:[%s2 + $0x1c] sm:$0xf]
      %v358 = vunpack.c.l.b16 %v342
      %v359 = vunpack.c.l.b16 %v343
      %v360 = vunpack.c.l.b16 %v344
      %v361 = vunpack.c.l.b16 %v345
      %v362 = vunpack.c.l.b16 %v346
      %v363 = vunpack.c.l.b16 %v347
      %v364 = vunpack.c.l.b16 %v348
      %v365 = vunpack.c.l.b16 %v349
      %v366 = vpack.c.b16 %v359, %v358
      %v367 = vpack.c.b16 %v361, %v360
      %v368 = vpack.c.b16 %v363, %v362
      %v369 = vpack.c.b16 %v365, %v364
      %vm374 = vcmask 523264
      %v376 = vsel %vm374, %v339, 0
      %v379 = vsel %vm374, %v340, 0
      %v382 = vsel %vm374, %v341, 0
      %384 = vmatpush.bf16.msra.mxu0 0
      %385 = vmatpush.bf16.msra.mxu0 0
      %386 = vmatpush.bf16.msra.mxu0 0
      %387 = vmatpush.bf16.msra.mxu0 0
      %388 = vmatpush.bf16.msra.mxu0 %v369
      %389 = vmatpush.bf16.msra.mxu0 %v368
      %390 = vmatpush.bf16.msra.mxu0 %v367
      %391 = vmatpush.bf16.msra.mxu0 %v366
      %392 = vmatmul.bf16.gmra.mxu0 %v376
      %v393 = vpop.f32.mrf.mxu0
      %v394 = vadd.f32 0.0, %v393
      %v395 = vpop.f32.mrf.mxu0
      %v396 = vadd.f32 0.0, %v395
      %397 = vmatmul.bf16.gmra.mxu0 %v379
      %v398 = vpop.f32.mrf.mxu0
      %v399 = vadd.f32 0.0, %v398
      %v400 = vpop.f32.mrf.mxu0
      %v401 = vadd.f32 0.0, %v400
      %402 = vmatmul.bf16.gmra.mxu0 %v382
      %v403 = vpop.f32.mrf.mxu0
      %v404 = vadd.f32 0.0, %v403
      %v405 = vpop.f32.mrf.mxu0
      %406 = vdwg.mxu0
      %407 = vst [vmem:[#allocation2] sm:$0xff] %v394
      %408 = vst [vmem:[#allocation2 + $0x8] sm:$0xff] %v396
      %409 = vst [vmem:[#allocation2 + $0x10] sm:$0xff] %v399
      %410 = vst [vmem:[#allocation2 + $0x18] sm:$0xff] %v401
      %411 = vst [vmem:[#allocation2 + $0x20] sm:$0x3] %v404
      %s412 = scalar_lea.vmem %s2, 32
      %v413 = vld [vmem:[%s412] sm:$0xf]
      %v414 = vld [vmem:[%s412 + $0x4] sm:$0xf]
      %v415 = vld [vmem:[%s412 + $0x8] sm:$0xf]
      %v416 = vld [vmem:[%s412 + $0xc] sm:$0xf]
      %v417 = vld [vmem:[%s412 + $0x10] sm:$0xf]
      %v418 = vld [vmem:[%s412 + $0x14] sm:$0xf]
      %v419 = vld [vmem:[%s412 + $0x18] sm:$0xf]
      %v420 = vld [vmem:[%s412 + $0x1c] sm:$0xf]
      %v429 = vunpack.c.l.b16 %v413
      %v430 = vunpack.c.l.b16 %v414
      %v431 = vunpack.c.l.b16 %v415
      %v432 = vunpack.c.l.b16 %v416
      %v433 = vunpack.c.l.b16 %v417
      %v434 = vunpack.c.l.b16 %v418
      %v435 = vunpack.c.l.b16 %v419
      %v436 = vunpack.c.l.b16 %v420
      %v437 = vpack.c.b16 %v430, %v429
      %v438 = vpack.c.b16 %v432, %v431
      %v439 = vpack.c.b16 %v434, %v433
      %v440 = vpack.c.b16 %v436, %v435
      %445 = vmatpush.bf16.msra.mxu0 0
      %446 = vmatpush.bf16.msra.mxu0 0
      %447 = vmatpush.bf16.msra.mxu0 0
      %448 = vmatpush.bf16.msra.mxu0 0
      %449 = vmatpush.bf16.msra.mxu0 %v440
      %450 = vmatpush.bf16.msra.mxu0 %v439
      %451 = vmatpush.bf16.msra.mxu0 %v438
      %452 = vmatpush.bf16.msra.mxu0 %v437
      %453 = vmatmul.bf16.gmra.mxu0 %v376
      %v454 = vpop.f32.mrf.mxu0
      %v455 = vadd.f32 0.0, %v454
      %v456 = vpop.f32.mrf.mxu0
      %v457 = vadd.f32 0.0, %v456
      %458 = vmatmul.bf16.gmra.mxu0 %v379
      %v459 = vpop.f32.mrf.mxu0
      %v460 = vadd.f32 0.0, %v459
      %v461 = vpop.f32.mrf.mxu0
      %v462 = vadd.f32 0.0, %v461
      %463 = vmatmul.bf16.gmra.mxu0 %v382
      %v464 = vpop.f32.mrf.mxu0
      %v465 = vadd.f32 0.0, %v464
      %v466 = vpop.f32.mrf.mxu0
      %467 = vdwg.mxu0
      %s468 = scalar_lea.vmem [#allocation2], 40
      %469 = vst [vmem:[%s468] sm:$0xff] %v455
      %470 = vst [vmem:[%s468 + $0x8] sm:$0xff] %v457
      %471 = vst [vmem:[%s468 + $0x10] sm:$0xff] %v460
      %472 = vst [vmem:[%s468 + $0x18] sm:$0xff] %v462
      %473 = vst [vmem:[%s468 + $0x20] sm:$0x3] %v465
      %s474 = scalar_lea.vmem %s2, 64
      %v475 = vld [vmem:[%s474] sm:$0xf]
      %v476 = vld [vmem:[%s474 + $0x4] sm:$0xf]
      %v477 = vld [vmem:[%s474 + $0x8] sm:$0xf]
      %v478 = vld [vmem:[%s474 + $0xc] sm:$0xf]
      %v479 = vld [vmem:[%s474 + $0x10] sm:$0xf]
      %v480 = vld [vmem:[%s474 + $0x14] sm:$0xf]
      %v481 = vld [vmem:[%s474 + $0x18] sm:$0xf]
      %v482 = vld [vmem:[%s474 + $0x1c] sm:$0xf]
      %v491 = vunpack.c.l.b16 %v475
      %v492 = vunpack.c.l.b16 %v476
      %v493 = vunpack.c.l.b16 %v477
      %v494 = vunpack.c.l.b16 %v478
      %v495 = vunpack.c.l.b16 %v479
      %v496 = vunpack.c.l.b16 %v480
      %v497 = vunpack.c.l.b16 %v481
      %v498 = vunpack.c.l.b16 %v482
      %v499 = vpack.c.b16 %v492, %v491
      %v500 = vpack.c.b16 %v494, %v493
      %v501 = vpack.c.b16 %v496, %v495
      %v502 = vpack.c.b16 %v498, %v497
      %507 = vmatpush.bf16.msra.mxu0 0
      %508 = vmatpush.bf16.msra.mxu0 0
      %509 = vmatpush.bf16.msra.mxu0 0
      %510 = vmatpush.bf16.msra.mxu0 0
      %511 = vmatpush.bf16.msra.mxu0 %v502
      %512 = vmatpush.bf16.msra.mxu0 %v501
      %513 = vmatpush.bf16.msra.mxu0 %v500
      %514 = vmatpush.bf16.msra.mxu0 %v499
      %515 = vmatmul.bf16.gmra.mxu0 %v376
      %v516 = vpop.f32.mrf.mxu0
      %v517 = vadd.f32 0.0, %v516
      %v518 = vpop.f32.mrf.mxu0
      %v519 = vadd.f32 0.0, %v518
      %520 = vmatmul.bf16.gmra.mxu0 %v379
      %v521 = vpop.f32.mrf.mxu0
      %v522 = vadd.f32 0.0, %v521
      %v523 = vpop.f32.mrf.mxu0
      %v524 = vadd.f32 0.0, %v523
      %525 = vmatmul.bf16.gmra.mxu0 %v382
      %v526 = vpop.f32.mrf.mxu0
      %v527 = vadd.f32 0.0, %v526
      %v528 = vpop.f32.mrf.mxu0
      %529 = vdwg.mxu0
      %s530 = scalar_lea.vmem [#allocation2], 80
      %531 = vst [vmem:[%s530] sm:$0xff] %v517
      %532 = vst [vmem:[%s530 + $0x8] sm:$0xff] %v519
      %533 = vst [vmem:[%s530 + $0x10] sm:$0xff] %v522
      %534 = vst [vmem:[%s530 + $0x18] sm:$0xff] %v524
      %535 = vst [vmem:[%s530 + $0x20] sm:$0x3] %v527
      %v536 = vld [vmem:[%s3] sm:$0x1]
      %v537 = vld [vmem:[#allocation2] sm:$0xff]
      %v538 = vld [vmem:[#allocation2 + $0x8] sm:$0xff]
      %v539 = vld [vmem:[#allocation2 + $0x10] sm:$0xff]
      %v540 = vld [vmem:[#allocation2 + $0x18] sm:$0xff]
      %v541 = vperm.slane %v536, 0
      %v542 = vmul.f32 %v541, %v537
      %v543 = vmul.f32 %v541, %v538
      %v544 = vmul.f32 %v541, %v539
      %v545 = vmul.f32 %v541, %v540
      %v546 = vadd.f32 %v542, 0.0
      %v547 = vadd.f32 %v543, 0.0
      %v548 = vadd.f32 %v544, 0.0
      %v549 = vadd.f32 %v545, 0.0
      %v550 = vld [vmem:[%s3 + $0x1] sm:$0x1]
      %v551 = vld [vmem:[%s468] sm:$0xff]
      %v552 = vld [vmem:[%s468 + $0x8] sm:$0xff]
      %v553 = vld [vmem:[%s468 + $0x10] sm:$0xff]
      %v554 = vld [vmem:[%s468 + $0x18] sm:$0xff]
      %v555 = vperm.slane %v550, 0
      %v556 = vmul.f32 %v555, %v551
      %v557 = vmul.f32 %v555, %v552
      %v558 = vmul.f32 %v555, %v553
      %v559 = vmul.f32 %v555, %v554
      %v560 = vadd.f32 %v546, %v556
      %v561 = vadd.f32 %v547, %v557
      %v562 = vadd.f32 %v548, %v558
      %v563 = vadd.f32 %v549, %v559
      %v564 = vld [vmem:[%s3 + $0x2] sm:$0x1]
      %v565 = vld [vmem:[%s530] sm:$0xff]
      %v566 = vld [vmem:[%s530 + $0x8] sm:$0xff]
      %v567 = vld [vmem:[%s530 + $0x10] sm:$0xff]
      %v568 = vld [vmem:[%s530 + $0x18] sm:$0xff]
      %v569 = vperm.slane %v564, 0
      %v570 = vmul.f32 %v569, %v565
      %v571 = vmul.f32 %v569, %v566
      %v572 = vmul.f32 %v569, %v567
      %v573 = vmul.f32 %v569, %v568
      %v574 = vadd.f32 %v560, %v570
      %v575 = vadd.f32 %v561, %v571
      %v576 = vadd.f32 %v562, %v572
      %v577 = vadd.f32 %v563, %v573
      %v578 = vld [vmem:[%s3 + $0x3] sm:$0x1]
      %v579 = vld [vmem:[#allocation2 + $0x1] sm:$0xff]
      %v580 = vld [vmem:[#allocation2 + $0x9] sm:$0xff]
      %v581 = vld [vmem:[#allocation2 + $0x11] sm:$0xff]
      %v582 = vld [vmem:[#allocation2 + $0x19] sm:$0xff]
      %v583 = vperm.slane %v578, 0
      %v584 = vmul.f32 %v583, %v579
      %v585 = vmul.f32 %v583, %v580
      %v586 = vmul.f32 %v583, %v581
      %v587 = vmul.f32 %v583, %v582
      %v588 = vadd.f32 %v574, %v584
      %v589 = vadd.f32 %v575, %v585
      %v590 = vadd.f32 %v576, %v586
      %v591 = vadd.f32 %v577, %v587
      %v592 = vld [vmem:[%s3 + $0x4] sm:$0x1]
      %v593 = vld [vmem:[%s468 + $0x1] sm:$0xff]
      %v594 = vld [vmem:[%s468 + $0x9] sm:$0xff]
      %v595 = vld [vmem:[%s468 + $0x11] sm:$0xff]
      %v596 = vld [vmem:[%s468 + $0x19] sm:$0xff]
      %v597 = vperm.slane %v592, 0
      %v598 = vmul.f32 %v597, %v593
      %v599 = vmul.f32 %v597, %v594
      %v600 = vmul.f32 %v597, %v595
      %v601 = vmul.f32 %v597, %v596
      %v602 = vadd.f32 %v588, %v598
      %v603 = vadd.f32 %v589, %v599
      %v604 = vadd.f32 %v590, %v600
      %v605 = vadd.f32 %v591, %v601
      %v606 = vld [vmem:[%s3 + $0x5] sm:$0x1]
      %v607 = vld [vmem:[%s530 + $0x1] sm:$0xff]
      %v608 = vld [vmem:[%s530 + $0x9] sm:$0xff]
      %v609 = vld [vmem:[%s530 + $0x11] sm:$0xff]
      %v610 = vld [vmem:[%s530 + $0x19] sm:$0xff]
      %v611 = vperm.slane %v606, 0
      %v612 = vmul.f32 %v611, %v607
      %v613 = vmul.f32 %v611, %v608
      %v614 = vmul.f32 %v611, %v609
      %v615 = vmul.f32 %v611, %v610
      %v616 = vadd.f32 %v602, %v612
      %v617 = vadd.f32 %v603, %v613
      %v618 = vadd.f32 %v604, %v614
      %v619 = vadd.f32 %v605, %v615
      %v620 = vld [vmem:[%s3 + $0x6] sm:$0x1]
      %v621 = vld [vmem:[#allocation2 + $0x2] sm:$0xff]
      %v622 = vld [vmem:[#allocation2 + $0xa] sm:$0xff]
      %v623 = vld [vmem:[#allocation2 + $0x12] sm:$0xff]
      %v624 = vld [vmem:[#allocation2 + $0x1a] sm:$0xff]
      %v625 = vperm.slane %v620, 0
      %v626 = vmul.f32 %v625, %v621
      %v627 = vmul.f32 %v625, %v622
      %v628 = vmul.f32 %v625, %v623
      %v629 = vmul.f32 %v625, %v624
      %v630 = vadd.f32 %v616, %v626
      %v631 = vadd.f32 %v617, %v627
      %v632 = vadd.f32 %v618, %v628
      %v633 = vadd.f32 %v619, %v629
      %v634 = vld [vmem:[%s3 + $0x7] sm:$0x1]
      %v635 = vld [vmem:[%s468 + $0x2] sm:$0xff]
      %v636 = vld [vmem:[%s468 + $0xa] sm:$0xff]
      %v637 = vld [vmem:[%s468 + $0x12] sm:$0xff]
      %v638 = vld [vmem:[%s468 + $0x1a] sm:$0xff]
      %v639 = vperm.slane %v634, 0
      %v640 = vmul.f32 %v639, %v635
      %v641 = vmul.f32 %v639, %v636
      %v642 = vmul.f32 %v639, %v637
      %v643 = vmul.f32 %v639, %v638
      %v644 = vadd.f32 %v630, %v640
      %v645 = vadd.f32 %v631, %v641
      %v646 = vadd.f32 %v632, %v642
      %v647 = vadd.f32 %v633, %v643
      %v648 = vld [vmem:[%s3 + $0x8] sm:$0x1]
      %v649 = vld [vmem:[%s530 + $0x2] sm:$0xff]
      %v650 = vld [vmem:[%s530 + $0xa] sm:$0xff]
      %v651 = vld [vmem:[%s530 + $0x12] sm:$0xff]
      %v652 = vld [vmem:[%s530 + $0x1a] sm:$0xff]
      %v653 = vperm.slane %v648, 0
      %v654 = vmul.f32 %v653, %v649
      %v655 = vmul.f32 %v653, %v650
      %v656 = vmul.f32 %v653, %v651
      %v657 = vmul.f32 %v653, %v652
      %v658 = vadd.f32 %v644, %v654
      %v659 = vadd.f32 %v645, %v655
      %v660 = vadd.f32 %v646, %v656
      %v661 = vadd.f32 %v647, %v657
      %v662 = vpack.c.bf16 %v659, %v658
      %v663 = vpack.c.bf16 %v661, %v660
      %v664 = vld [vmem:[%s4] sm:$0xff]
      %v665 = vld [vmem:[%s4 + $0x8] sm:$0xff]
      %v666 = vld [vmem:[%s4 + $0x10] sm:$0xff]
      %v667 = vld [vmem:[%s4 + $0x18] sm:$0xff]
      %v668 = vld [vmem:[%s4 + $0x20] sm:$0xff]
      %v669 = vld [vmem:[%s4 + $0x28] sm:$0xff]
      %v670 = vld [vmem:[%s4 + $0x30] sm:$0xff]
      %v671 = vld [vmem:[%s4 + $0x38] sm:$0xff]
      %v672 = vld [vmem:[%s4 + $0x40] sm:$0xff]
      %v673 = vld [vmem:[%s4 + $0x48] sm:$0xff]
      %v674 = vld [vmem:[%s4 + $0x50] sm:$0xff]
      %v675 = vld [vmem:[%s4 + $0x58] sm:$0xff]
      %v676 = vld [vmem:[%s4 + $0x60] sm:$0xff]
      %v677 = vld [vmem:[%s4 + $0x68] sm:$0xff]
      %v678 = vld [vmem:[%s4 + $0x70] sm:$0xff]
      %v679 = vld [vmem:[%s4 + $0x78] sm:$0xff]
      %v696 = vunpack.c.l.b16 %v664
      %v697 = vunpack.c.h.b16 %v664
      %v698 = vunpack.c.l.b16 %v665
      %v699 = vunpack.c.h.b16 %v665
      %v700 = vunpack.c.l.b16 %v666
      %v701 = vunpack.c.h.b16 %v666
      %v702 = vunpack.c.l.b16 %v667
      %v703 = vunpack.c.h.b16 %v667
      %v704 = vunpack.c.l.b16 %v668
      %v705 = vunpack.c.h.b16 %v668
      %v706 = vunpack.c.l.b16 %v669
      %v707 = vunpack.c.h.b16 %v669
      %v708 = vunpack.c.l.b16 %v670
      %v709 = vunpack.c.h.b16 %v670
      %v710 = vunpack.c.l.b16 %v671
      %v711 = vunpack.c.h.b16 %v671
      %v712 = vunpack.c.l.b16 %v672
      %v713 = vunpack.c.h.b16 %v672
      %v714 = vunpack.c.l.b16 %v673
      %v715 = vunpack.c.h.b16 %v673
      %v716 = vunpack.c.l.b16 %v674
      %v717 = vunpack.c.h.b16 %v674
      %v718 = vunpack.c.l.b16 %v675
      %v719 = vunpack.c.h.b16 %v675
      %v720 = vunpack.c.l.b16 %v676
      %v721 = vunpack.c.h.b16 %v676
      %v722 = vunpack.c.l.b16 %v677
      %v723 = vunpack.c.h.b16 %v677
      %v724 = vunpack.c.l.b16 %v678
      %v725 = vunpack.c.h.b16 %v678
      %v726 = vunpack.c.l.b16 %v679
      %v727 = vunpack.c.h.b16 %v679
      %v728 = vpack.c.b16 %v698, %v696
      %v729 = vpack.c.b16 %v699, %v697
      %v730 = vpack.c.b16 %v702, %v700
      %v731 = vpack.c.b16 %v703, %v701
      %v732 = vpack.c.b16 %v706, %v704
      %v733 = vpack.c.b16 %v707, %v705
      %v734 = vpack.c.b16 %v710, %v708
      %v735 = vpack.c.b16 %v711, %v709
      %v736 = vpack.c.b16 %v714, %v712
      %v737 = vpack.c.b16 %v715, %v713
      %v738 = vpack.c.b16 %v718, %v716
      %v739 = vpack.c.b16 %v719, %v717
      %v740 = vpack.c.b16 %v722, %v720
      %v741 = vpack.c.b16 %v723, %v721
      %v742 = vpack.c.b16 %v726, %v724
      %v743 = vpack.c.b16 %v727, %v725
      %760 = vmatpush.bf16.msra.mxu0 %v742
      %761 = vmatpush.bf16.msra.mxu0 %v740
      %762 = vmatpush.bf16.msra.mxu0 %v738
      %763 = vmatpush.bf16.msra.mxu0 %v736
      %764 = vmatpush.bf16.msra.mxu0 %v734
      %765 = vmatpush.bf16.msra.mxu0 %v732
      %766 = vmatpush.bf16.msra.mxu0 %v730
      %767 = vmatpush.bf16.msra.mxu0 %v728
      %768 = vmatmul.bf16.gmra.mxu0 %v662
      %v769 = vpop.f32.mrf.mxu0
      %v770 = vadd.f32 0.0, %v769
      %v771 = vpop.f32.mrf.mxu0
      %v772 = vadd.f32 0.0, %v771
      %773 = vmatmul.bf16.gmra.mxu0 %v663
      %v774 = vpop.f32.mrf.mxu0
      %v775 = vadd.f32 0.0, %v774
      %v776 = vpop.f32.mrf.mxu0
      %v777 = vadd.f32 0.0, %v776
      %778 = vdwg.mxu0
      %779 = vmatpush.bf16.msra.mxu0 %v743
      %780 = vmatpush.bf16.msra.mxu0 %v741
      %781 = vmatpush.bf16.msra.mxu0 %v739
      %782 = vmatpush.bf16.msra.mxu0 %v737
      %783 = vmatpush.bf16.msra.mxu0 %v735
      %784 = vmatpush.bf16.msra.mxu0 %v733
      %785 = vmatpush.bf16.msra.mxu0 %v731
      %786 = vmatpush.bf16.msra.mxu0 %v729
      %787 = vmatmul.bf16.gmra.mxu0 %v662
      %v788 = vpop.f32.mrf.mxu0
      %v789 = vadd.f32 0.0, %v788
      %v790 = vpop.f32.mrf.mxu0
      %v791 = vadd.f32 0.0, %v790
      %792 = vmatmul.bf16.gmra.mxu0 %v663
      %v793 = vpop.f32.mrf.mxu0
      %v794 = vadd.f32 0.0, %v793
      %v795 = vpop.f32.mrf.mxu0
      %v796 = vadd.f32 0.0, %v795
      %797 = vdwg.mxu0
      %v798 = vadd.f32 %v770, %v772
      %v799 = vadd.f32 %v798, %v775
      %v800 = vadd.f32 %v799, %v777
      %v801 = vrot.slane %v800, 4
      %v802 = vadd.f32 %v800, %v801
      %v803 = vrot.slane %v802, 2
      %v804 = vadd.f32 %v802, %v803
      %v805 = vrot.slane %v804, 1
      %v806 = vadd.f32 %v804, %v805
      %v807 = vadd.f32 %v789, %v791
      %v808 = vadd.f32 %v807, %v794
      %v809 = vadd.f32 %v808, %v796
      %v810 = vrot.slane %v809, 4
      %v811 = vadd.f32 %v809, %v810
      %v812 = vrot.slane %v811, 2
      %v813 = vadd.f32 %v811, %v812
      %v814 = vrot.slane %v813, 1
      %v815 = vadd.f32 %v813, %v814
      %v816 = vmul.f32 %v770, %v770
      %v817 = vmul.f32 %v789, %v789
      %v818 = vmul.f32 %v772, %v772
      %v819 = vmul.f32 %v791, %v791
      %v820 = vmul.f32 %v775, %v775
      %v821 = vmul.f32 %v794, %v794
      %v822 = vmul.f32 %v777, %v777
      %v823 = vmul.f32 %v796, %v796
      %v824 = vadd.f32 %v816, %v818
      %v825 = vadd.f32 %v824, %v820
      %v826 = vadd.f32 %v825, %v822
      %v827 = vrot.slane %v826, 4
      %v828 = vadd.f32 %v826, %v827
      %v829 = vrot.slane %v828, 2
      %v830 = vadd.f32 %v828, %v829
      %v831 = vrot.slane %v830, 1
      %v832 = vadd.f32 %v830, %v831
      %v833 = vadd.f32 %v817, %v819
      %v834 = vadd.f32 %v833, %v821
      %v835 = vadd.f32 %v834, %v823
      %v836 = vrot.slane %v835, 4
      %v837 = vadd.f32 %v835, %v836
      %v838 = vrot.slane %v837, 2
      %v839 = vadd.f32 %v837, %v838
      %v840 = vrot.slane %v839, 1
      %v841 = vadd.f32 %v839, %v840
      %v842 = vld [vmem:[%s5] sm:$0xff]
      %v843 = vld [vmem:[%s5 + $0x8] sm:$0xff]
      %v844 = vld [vmem:[%s5 + $0x10] sm:$0xff]
      %v845 = vld [vmem:[%s5 + $0x18] sm:$0xff]
      %v846 = vld [vmem:[%s5 + $0x20] sm:$0xff]
      %v847 = vld [vmem:[%s5 + $0x28] sm:$0xff]
      %v848 = vld [vmem:[%s5 + $0x30] sm:$0xff]
      %v849 = vld [vmem:[%s5 + $0x38] sm:$0xff]
      %v850 = vld [vmem:[%s5 + $0x40] sm:$0xff]
      %v851 = vld [vmem:[%s5 + $0x48] sm:$0xff]
      %v852 = vld [vmem:[%s5 + $0x50] sm:$0xff]
      %v853 = vld [vmem:[%s5 + $0x58] sm:$0xff]
      %v854 = vld [vmem:[%s5 + $0x60] sm:$0xff]
      %v855 = vld [vmem:[%s5 + $0x68] sm:$0xff]
      %v856 = vld [vmem:[%s5 + $0x70] sm:$0xff]
      %v857 = vld [vmem:[%s5 + $0x78] sm:$0xff]
      %v858 = vld [vmem:[%s5 + $0x80] sm:$0xff]
      %v859 = vld [vmem:[%s5 + $0x88] sm:$0xff]
      %v860 = vld [vmem:[%s5 + $0x90] sm:$0xff]
      %v861 = vld [vmem:[%s5 + $0x98] sm:$0xff]
      %v862 = vld [vmem:[%s5 + $0xa0] sm:$0xff]
      %v863 = vld [vmem:[%s5 + $0xa8] sm:$0xff]
      %v864 = vld [vmem:[%s5 + $0xb0] sm:$0xff]
      %v865 = vld [vmem:[%s5 + $0xb8] sm:$0xff]
      %v866 = vld [vmem:[%s5 + $0xc0] sm:$0xff]
      %v867 = vld [vmem:[%s5 + $0xc8] sm:$0xff]
      %v868 = vld [vmem:[%s5 + $0xd0] sm:$0xff]
      %v869 = vld [vmem:[%s5 + $0xd8] sm:$0xff]
      %v870 = vld [vmem:[%s5 + $0xe0] sm:$0xff]
      %v871 = vld [vmem:[%s5 + $0xe8] sm:$0xff]
      %v872 = vld [vmem:[%s5 + $0xf0] sm:$0xff]
      %v873 = vld [vmem:[%s5 + $0xf8] sm:$0xff]
      %v874 = vand.u32 %v857, 4294901760
      %875 = vmatpush.msra.mxu0 %v874
      %v876 = vand.u32 %v856, 4294901760
      %877 = vmatpush.msra.mxu0 %v876
      %v878 = vand.u32 %v855, 4294901760
      %879 = vmatpush.msra.mxu0 %v878
      %v880 = vand.u32 %v854, 4294901760
      %881 = vmatpush.msra.mxu0 %v880
      %v882 = vand.u32 %v853, 4294901760
      %883 = vmatpush.msra.mxu0 %v882
      %v884 = vand.u32 %v852, 4294901760
      %885 = vmatpush.msra.mxu0 %v884
      %v886 = vand.u32 %v851, 4294901760
      %887 = vmatpush.msra.mxu0 %v886
      %v888 = vand.u32 %v850, 4294901760
      %889 = vmatpush.msra.mxu0 %v888
      %v890 = vand.u32 %v849, 4294901760
      %891 = vmatpush.msra.mxu0 %v890
      %v892 = vand.u32 %v848, 4294901760
      %893 = vmatpush.msra.mxu0 %v892
      %v894 = vand.u32 %v847, 4294901760
      %895 = vmatpush.msra.mxu0 %v894
      %v896 = vand.u32 %v846, 4294901760
      %897 = vmatpush.msra.mxu0 %v896
      %v898 = vand.u32 %v845, 4294901760
      %899 = vmatpush.msra.mxu0 %v898
      %v900 = vand.u32 %v844, 4294901760
      %901 = vmatpush.msra.mxu0 %v900
      %v902 = vand.u32 %v843, 4294901760
      %903 = vmatpush.msra.mxu0 %v902
      %v904 = vand.u32 %v842, 4294901760
      %905 = vmatpush.msra.mxu0 %v904
      %v906 = vand.u32 %v806, 4294901760
      %v907 = vsub.f32 %v806, %v906
      %v908 = vand.u32 %v907, 4294901760
      %v909 = vsub.f32 %v907, %v908
      %v910 = vand.u32 %v909, 4294901760
      %911 = vmatmul.f32.gmra.mxu0 %v910
      %v912 = vpop.f32.mrf.mxu0
      %v913 = vadd.f32 0.0, %v912
      %914 = vdwg.mxu0
      %v915 = vand.u32 %v857, 4294901760
      %v916 = vsub.f32 %v857, %v915
      %v917 = vand.u32 %v916, 4294901760
      %v918 = vsub.f32 %v916, %v917
      %v919 = vand.u32 %v918, 4294901760
      %920 = vmatpush.msra.mxu0 %v919
      %v921 = vand.u32 %v856, 4294901760
      %v922 = vsub.f32 %v856, %v921
      %v923 = vand.u32 %v922, 4294901760
      %v924 = vsub.f32 %v922, %v923
      %v925 = vand.u32 %v924, 4294901760
      %926 = vmatpush.msra.mxu0 %v925
      %v927 = vand.u32 %v855, 4294901760
      %v928 = vsub.f32 %v855, %v927
      %v929 = vand.u32 %v928, 4294901760
      %v930 = vsub.f32 %v928, %v929
      %v931 = vand.u32 %v930, 4294901760
      %932 = vmatpush.msra.mxu0 %v931
      %v933 = vand.u32 %v854, 4294901760
      %v934 = vsub.f32 %v854, %v933
      %v935 = vand.u32 %v934, 4294901760
      %v936 = vsub.f32 %v934, %v935
      %v937 = vand.u32 %v936, 4294901760
      %938 = vmatpush.msra.mxu0 %v937
      %v939 = vand.u32 %v853, 4294901760
      %v940 = vsub.f32 %v853, %v939
      %v941 = vand.u32 %v940, 4294901760
      %v942 = vsub.f32 %v940, %v941
      %v943 = vand.u32 %v942, 4294901760
      %944 = vmatpush.msra.mxu0 %v943
      %v945 = vand.u32 %v852, 4294901760
      %v946 = vsub.f32 %v852, %v945
      %v947 = vand.u32 %v946, 4294901760
      %v948 = vsub.f32 %v946, %v947
      %v949 = vand.u32 %v948, 4294901760
      %950 = vmatpush.msra.mxu0 %v949
      %v951 = vand.u32 %v851, 4294901760
      %v952 = vsub.f32 %v851, %v951
      %v953 = vand.u32 %v952, 4294901760
      %v954 = vsub.f32 %v952, %v953
      %v955 = vand.u32 %v954, 4294901760
      %956 = vmatpush.msra.mxu0 %v955
      %v957 = vand.u32 %v850, 4294901760
      %v958 = vsub.f32 %v850, %v957
      %v959 = vand.u32 %v958, 4294901760
      %v960 = vsub.f32 %v958, %v959
      %v961 = vand.u32 %v960, 4294901760
      %962 = vmatpush.msra.mxu0 %v961
      %v963 = vand.u32 %v849, 4294901760
      %v964 = vsub.f32 %v849, %v963
      %v965 = vand.u32 %v964, 4294901760
      %v966 = vsub.f32 %v964, %v965
      %v967 = vand.u32 %v966, 4294901760
      %968 = vmatpush.msra.mxu0 %v967
      %v969 = vand.u32 %v848, 4294901760
      %v970 = vsub.f32 %v848, %v969
      %v971 = vand.u32 %v970, 4294901760
      %v972 = vsub.f32 %v970, %v971
      %v973 = vand.u32 %v972, 4294901760
      %974 = vmatpush.msra.mxu0 %v973
      %v975 = vand.u32 %v847, 4294901760
      %v976 = vsub.f32 %v847, %v975
      %v977 = vand.u32 %v976, 4294901760
      %v978 = vsub.f32 %v976, %v977
      %v979 = vand.u32 %v978, 4294901760
      %980 = vmatpush.msra.mxu0 %v979
      %v981 = vand.u32 %v846, 4294901760
      %v982 = vsub.f32 %v846, %v981
      %v983 = vand.u32 %v982, 4294901760
      %v984 = vsub.f32 %v982, %v983
      %v985 = vand.u32 %v984, 4294901760
      %986 = vmatpush.msra.mxu0 %v985
      %v987 = vand.u32 %v845, 4294901760
      %v988 = vsub.f32 %v845, %v987
      %v989 = vand.u32 %v988, 4294901760
      %v990 = vsub.f32 %v988, %v989
      %v991 = vand.u32 %v990, 4294901760
      %992 = vmatpush.msra.mxu0 %v991
      %v993 = vand.u32 %v844, 4294901760
      %v994 = vsub.f32 %v844, %v993
      %v995 = vand.u32 %v994, 4294901760
      %v996 = vsub.f32 %v994, %v995
      %v997 = vand.u32 %v996, 4294901760
      %998 = vmatpush.msra.mxu0 %v997
      %v999 = vand.u32 %v843, 4294901760
      %v1000 = vsub.f32 %v843, %v999
      %v1001 = vand.u32 %v1000, 4294901760
      %v1002 = vsub.f32 %v1000, %v1001
      %v1003 = vand.u32 %v1002, 4294901760
      %1004 = vmatpush.msra.mxu0 %v1003
      %v1005 = vand.u32 %v842, 4294901760
      %v1006 = vsub.f32 %v842, %v1005
      %v1007 = vand.u32 %v1006, 4294901760
      %v1008 = vsub.f32 %v1006, %v1007
      %v1009 = vand.u32 %v1008, 4294901760
      %1010 = vmatpush.msra.mxu0 %v1009
      %v1011 = vand.u32 %v806, 4294901760
      %1012 = vmatmul.f32.gmra.mxu0 %v1011
      %v1013 = vpop.f32.mrf.mxu0
      %v1014 = vadd.f32 %v913, %v1013
      %1015 = vdwg.mxu0
      %v1016 = vand.u32 %v857, 4294901760
      %v1017 = vsub.f32 %v857, %v1016
      %1018 = vmatpush.msra.mxu0 %v1017
      %v1019 = vand.u32 %v856, 4294901760
      %v1020 = vsub.f32 %v856, %v1019
      %1021 = vmatpush.msra.mxu0 %v1020
      %v1022 = vand.u32 %v855, 4294901760
      %v1023 = vsub.f32 %v855, %v1022
      %1024 = vmatpush.msra.mxu0 %v1023
      %v1025 = vand.u32 %v854, 4294901760
      %v1026 = vsub.f32 %v854, %v1025
      %1027 = vmatpush.msra.mxu0 %v1026
      %v1028 = vand.u32 %v853, 4294901760
      %v1029 = vsub.f32 %v853, %v1028
      %1030 = vmatpush.msra.mxu0 %v1029
      %v1031 = vand.u32 %v852, 4294901760
      %v1032 = vsub.f32 %v852, %v1031
      %1033 = vmatpush.msra.mxu0 %v1032
      %v1034 = vand.u32 %v851, 4294901760
      %v1035 = vsub.f32 %v851, %v1034
      %1036 = vmatpush.msra.mxu0 %v1035
      %v1037 = vand.u32 %v850, 4294901760
      %v1038 = vsub.f32 %v850, %v1037
      %1039 = vmatpush.msra.mxu0 %v1038
      %v1040 = vand.u32 %v849, 4294901760
      %v1041 = vsub.f32 %v849, %v1040
      %1042 = vmatpush.msra.mxu0 %v1041
      %v1043 = vand.u32 %v848, 4294901760
      %v1044 = vsub.f32 %v848, %v1043
      %1045 = vmatpush.msra.mxu0 %v1044
      %v1046 = vand.u32 %v847, 4294901760
      %v1047 = vsub.f32 %v847, %v1046
      %1048 = vmatpush.msra.mxu0 %v1047
      %v1049 = vand.u32 %v846, 4294901760
      %v1050 = vsub.f32 %v846, %v1049
      %1051 = vmatpush.msra.mxu0 %v1050
      %v1052 = vand.u32 %v845, 4294901760
      %v1053 = vsub.f32 %v845, %v1052
      %1054 = vmatpush.msra.mxu0 %v1053
      %v1055 = vand.u32 %v844, 4294901760
      %v1056 = vsub.f32 %v844, %v1055
      %1057 = vmatpush.msra.mxu0 %v1056
      %v1058 = vand.u32 %v843, 4294901760
      %v1059 = vsub.f32 %v843, %v1058
      %1060 = vmatpush.msra.mxu0 %v1059
      %v1061 = vand.u32 %v842, 4294901760
      %v1062 = vsub.f32 %v842, %v1061
      %1063 = vmatpush.msra.mxu0 %v1062
      %v1064 = vand.u32 %v806, 4294901760
      %v1065 = vsub.f32 %v806, %v1064
      %1066 = vmatmul.f32.gmra.mxu0 %v1065
      %v1067 = vpop.f32.mrf.mxu0
      %v1068 = vadd.f32 %v1014, %v1067
      %1069 = vdwg.mxu0
      %v1070 = vand.u32 %v857, 4294901760
      %1071 = vmatpush.msra.mxu0 %v1070
      %v1072 = vand.u32 %v856, 4294901760
      %1073 = vmatpush.msra.mxu0 %v1072
      %v1074 = vand.u32 %v855, 4294901760
      %1075 = vmatpush.msra.mxu0 %v1074
      %v1076 = vand.u32 %v854, 4294901760
      %1077 = vmatpush.msra.mxu0 %v1076
      %v1078 = vand.u32 %v853, 4294901760
      %1079 = vmatpush.msra.mxu0 %v1078
      %v1080 = vand.u32 %v852, 4294901760
      %1081 = vmatpush.msra.mxu0 %v1080
      %v1082 = vand.u32 %v851, 4294901760
      %1083 = vmatpush.msra.mxu0 %v1082
      %v1084 = vand.u32 %v850, 4294901760
      %1085 = vmatpush.msra.mxu0 %v1084
      %v1086 = vand.u32 %v849, 4294901760
      %1087 = vmatpush.msra.mxu0 %v1086
      %v1088 = vand.u32 %v848, 4294901760
      %1089 = vmatpush.msra.mxu0 %v1088
      %v1090 = vand.u32 %v847, 4294901760
      %1091 = vmatpush.msra.mxu0 %v1090
      %v1092 = vand.u32 %v846, 4294901760
      %1093 = vmatpush.msra.mxu0 %v1092
      %v1094 = vand.u32 %v845, 4294901760
      %1095 = vmatpush.msra.mxu0 %v1094
      %v1096 = vand.u32 %v844, 4294901760
      %1097 = vmatpush.msra.mxu0 %v1096
      %v1098 = vand.u32 %v843, 4294901760
      %1099 = vmatpush.msra.mxu0 %v1098
      %v1100 = vand.u32 %v842, 4294901760
      %1101 = vmatpush.msra.mxu0 %v1100
      %v1102 = vand.u32 %v806, 4294901760
      %v1103 = vsub.f32 %v806, %v1102
      %v1104 = vand.u32 %v1103, 4294901760
      %1105 = vmatmul.f32.gmra.mxu0 %v1104
      %v1106 = vpop.f32.mrf.mxu0
      %v1107 = vadd.f32 %v1068, %v1106
      %1108 = vdwg.mxu0
      %v1109 = vand.u32 %v857, 4294901760
      %v1110 = vsub.f32 %v857, %v1109
      %v1111 = vand.u32 %v1110, 4294901760
      %1112 = vmatpush.msra.mxu0 %v1111
      %v1113 = vand.u32 %v856, 4294901760
      %v1114 = vsub.f32 %v856, %v1113
      %v1115 = vand.u32 %v1114, 4294901760
      %1116 = vmatpush.msra.mxu0 %v1115
      %v1117 = vand.u32 %v855, 4294901760
      %v1118 = vsub.f32 %v855, %v1117
      %v1119 = vand.u32 %v1118, 4294901760
      %1120 = vmatpush.msra.mxu0 %v1119
      %v1121 = vand.u32 %v854, 4294901760
      %v1122 = vsub.f32 %v854, %v1121
      %v1123 = vand.u32 %v1122, 4294901760
      %1124 = vmatpush.msra.mxu0 %v1123
      %v1125 = vand.u32 %v853, 4294901760
      %v1126 = vsub.f32 %v853, %v1125
      %v1127 = vand.u32 %v1126, 4294901760
      %1128 = vmatpush.msra.mxu0 %v1127
      %v1129 = vand.u32 %v852, 4294901760
      %v1130 = vsub.f32 %v852, %v1129
      %v1131 = vand.u32 %v1130, 4294901760
      %1132 = vmatpush.msra.mxu0 %v1131
      %v1133 = vand.u32 %v851, 4294901760
      %v1134 = vsub.f32 %v851, %v1133
      %v1135 = vand.u32 %v1134, 4294901760
      %1136 = vmatpush.msra.mxu0 %v1135
      %v1137 = vand.u32 %v850, 4294901760
      %v1138 = vsub.f32 %v850, %v1137
      %v1139 = vand.u32 %v1138, 4294901760
      %1140 = vmatpush.msra.mxu0 %v1139
      %v1141 = vand.u32 %v849, 4294901760
      %v1142 = vsub.f32 %v849, %v1141
      %v1143 = vand.u32 %v1142, 4294901760
      %1144 = vmatpush.msra.mxu0 %v1143
      %v1145 = vand.u32 %v848, 4294901760
      %v1146 = vsub.f32 %v848, %v1145
      %v1147 = vand.u32 %v1146, 4294901760
      %1148 = vmatpush.msra.mxu0 %v1147
      %v1149 = vand.u32 %v847, 4294901760
      %v1150 = vsub.f32 %v847, %v1149
      %v1151 = vand.u32 %v1150, 4294901760
      %1152 = vmatpush.msra.mxu0 %v1151
      %v1153 = vand.u32 %v846, 4294901760
      %v1154 = vsub.f32 %v846, %v1153
      %v1155 = vand.u32 %v1154, 4294901760
      %1156 = vmatpush.msra.mxu0 %v1155
      %v1157 = vand.u32 %v845, 4294901760
      %v1158 = vsub.f32 %v845, %v1157
      %v1159 = vand.u32 %v1158, 4294901760
      %1160 = vmatpush.msra.mxu0 %v1159
      %v1161 = vand.u32 %v844, 4294901760
      %v1162 = vsub.f32 %v844, %v1161
      %v1163 = vand.u32 %v1162, 4294901760
      %1164 = vmatpush.msra.mxu0 %v1163
      %v1165 = vand.u32 %v843, 4294901760
      %v1166 = vsub.f32 %v843, %v1165
      %v1167 = vand.u32 %v1166, 4294901760
      %1168 = vmatpush.msra.mxu0 %v1167
      %v1169 = vand.u32 %v842, 4294901760
      %v1170 = vsub.f32 %v842, %v1169
      %v1171 = vand.u32 %v1170, 4294901760
      %1172 = vmatpush.msra.mxu0 %v1171
      %v1173 = vand.u32 %v806, 4294901760
      %1174 = vmatmul.f32.gmra.mxu0 %v1173
      %v1175 = vpop.f32.mrf.mxu0
      %v1176 = vadd.f32 %v1107, %v1175
      %1177 = vdwg.mxu0
      %v1178 = vand.u32 %v857, 4294901760
      %1179 = vmatpush.msra.mxu0 %v1178
      %v1180 = vand.u32 %v856, 4294901760
      %1181 = vmatpush.msra.mxu0 %v1180
      %v1182 = vand.u32 %v855, 4294901760
      %1183 = vmatpush.msra.mxu0 %v1182
      %v1184 = vand.u32 %v854, 4294901760
      %1185 = vmatpush.msra.mxu0 %v1184
      %v1186 = vand.u32 %v853, 4294901760
      %1187 = vmatpush.msra.mxu0 %v1186
      %v1188 = vand.u32 %v852, 4294901760
      %1189 = vmatpush.msra.mxu0 %v1188
      %v1190 = vand.u32 %v851, 4294901760
      %1191 = vmatpush.msra.mxu0 %v1190
      %v1192 = vand.u32 %v850, 4294901760
      %1193 = vmatpush.msra.mxu0 %v1192
      %v1194 = vand.u32 %v849, 4294901760
      %1195 = vmatpush.msra.mxu0 %v1194
      %v1196 = vand.u32 %v848, 4294901760
      %1197 = vmatpush.msra.mxu0 %v1196
      %v1198 = vand.u32 %v847, 4294901760
      %1199 = vmatpush.msra.mxu0 %v1198
      %v1200 = vand.u32 %v846, 4294901760
      %1201 = vmatpush.msra.mxu0 %v1200
      %v1202 = vand.u32 %v845, 4294901760
      %1203 = vmatpush.msra.mxu0 %v1202
      %v1204 = vand.u32 %v844, 4294901760
      %1205 = vmatpush.msra.mxu0 %v1204
      %v1206 = vand.u32 %v843, 4294901760
      %1207 = vmatpush.msra.mxu0 %v1206
      %v1208 = vand.u32 %v842, 4294901760
      %1209 = vmatpush.msra.mxu0 %v1208
      %v1210 = vand.u32 %v806, 4294901760
      %1211 = vmatmul.f32.gmra.mxu0 %v1210
      %v1212 = vpop.f32.mrf.mxu0
      %v1213 = vadd.f32 %v1176, %v1212
      %1214 = vdwg.mxu0
      %v1215 = vand.u32 %v873, 4294901760
      %1216 = vmatpush.msra.mxu0 %v1215
      %v1217 = vand.u32 %v872, 4294901760
      %1218 = vmatpush.msra.mxu0 %v1217
      %v1219 = vand.u32 %v871, 4294901760
      %1220 = vmatpush.msra.mxu0 %v1219
      %v1221 = vand.u32 %v870, 4294901760
      %1222 = vmatpush.msra.mxu0 %v1221
      %v1223 = vand.u32 %v869, 4294901760
      %1224 = vmatpush.msra.mxu0 %v1223
      %v1225 = vand.u32 %v868, 4294901760
      %1226 = vmatpush.msra.mxu0 %v1225
      %v1227 = vand.u32 %v867, 4294901760
      %1228 = vmatpush.msra.mxu0 %v1227
      %v1229 = vand.u32 %v866, 4294901760
      %1230 = vmatpush.msra.mxu0 %v1229
      %v1231 = vand.u32 %v865, 4294901760
      %1232 = vmatpush.msra.mxu0 %v1231
      %v1233 = vand.u32 %v864, 4294901760
      %1234 = vmatpush.msra.mxu0 %v1233
      %v1235 = vand.u32 %v863, 4294901760
      %1236 = vmatpush.msra.mxu0 %v1235
      %v1237 = vand.u32 %v862, 4294901760
      %1238 = vmatpush.msra.mxu0 %v1237
      %v1239 = vand.u32 %v861, 4294901760
      %1240 = vmatpush.msra.mxu0 %v1239
      %v1241 = vand.u32 %v860, 4294901760
      %1242 = vmatpush.msra.mxu0 %v1241
      %v1243 = vand.u32 %v859, 4294901760
      %1244 = vmatpush.msra.mxu0 %v1243
      %v1245 = vand.u32 %v858, 4294901760
      %1246 = vmatpush.msra.mxu0 %v1245
      %v1247 = vand.u32 %v815, 4294901760
      %v1248 = vsub.f32 %v815, %v1247
      %v1249 = vand.u32 %v1248, 4294901760
      %v1250 = vsub.f32 %v1248, %v1249
      %v1251 = vand.u32 %v1250, 4294901760
      %1252 = vmatmul.f32.gmra.mxu0 %v1251
      %v1253 = vpop.f32.mrf.mxu0
      %v1254 = vadd.f32 %v1213, %v1253
      %1255 = vdwg.mxu0
      %v1256 = vand.u32 %v873, 4294901760
      %v1257 = vsub.f32 %v873, %v1256
      %v1258 = vand.u32 %v1257, 4294901760
      %v1259 = vsub.f32 %v1257, %v1258
      %v1260 = vand.u32 %v1259, 4294901760
      %1261 = vmatpush.msra.mxu0 %v1260
      %v1262 = vand.u32 %v872, 4294901760
      %v1263 = vsub.f32 %v872, %v1262
      %v1264 = vand.u32 %v1263, 4294901760
      %v1265 = vsub.f32 %v1263, %v1264
      %v1266 = vand.u32 %v1265, 4294901760
      %1267 = vmatpush.msra.mxu0 %v1266
      %v1268 = vand.u32 %v871, 4294901760
      %v1269 = vsub.f32 %v871, %v1268
      %v1270 = vand.u32 %v1269, 4294901760
      %v1271 = vsub.f32 %v1269, %v1270
      %v1272 = vand.u32 %v1271, 4294901760
      %1273 = vmatpush.msra.mxu0 %v1272
      %v1274 = vand.u32 %v870, 4294901760
      %v1275 = vsub.f32 %v870, %v1274
      %v1276 = vand.u32 %v1275, 4294901760
      %v1277 = vsub.f32 %v1275, %v1276
      %v1278 = vand.u32 %v1277, 4294901760
      %1279 = vmatpush.msra.mxu0 %v1278
      %v1280 = vand.u32 %v869, 4294901760
      %v1281 = vsub.f32 %v869, %v1280
      %v1282 = vand.u32 %v1281, 4294901760
      %v1283 = vsub.f32 %v1281, %v1282
      %v1284 = vand.u32 %v1283, 4294901760
      %1285 = vmatpush.msra.mxu0 %v1284
      %v1286 = vand.u32 %v868, 4294901760
      %v1287 = vsub.f32 %v868, %v1286
      %v1288 = vand.u32 %v1287, 4294901760
      %v1289 = vsub.f32 %v1287, %v1288
      %v1290 = vand.u32 %v1289, 4294901760
      %1291 = vmatpush.msra.mxu0 %v1290
      %v1292 = vand.u32 %v867, 4294901760
      %v1293 = vsub.f32 %v867, %v1292
      %v1294 = vand.u32 %v1293, 4294901760
      %v1295 = vsub.f32 %v1293, %v1294
      %v1296 = vand.u32 %v1295, 4294901760
      %1297 = vmatpush.msra.mxu0 %v1296
      %v1298 = vand.u32 %v866, 4294901760
      %v1299 = vsub.f32 %v866, %v1298
      %v1300 = vand.u32 %v1299, 4294901760
      %v1301 = vsub.f32 %v1299, %v1300
      %v1302 = vand.u32 %v1301, 4294901760
      %1303 = vmatpush.msra.mxu0 %v1302
      %v1304 = vand.u32 %v865, 4294901760
      %v1305 = vsub.f32 %v865, %v1304
      %v1306 = vand.u32 %v1305, 4294901760
      %v1307 = vsub.f32 %v1305, %v1306
      %v1308 = vand.u32 %v1307, 4294901760
      %1309 = vmatpush.msra.mxu0 %v1308
      %v1310 = vand.u32 %v864, 4294901760
      %v1311 = vsub.f32 %v864, %v1310
      %v1312 = vand.u32 %v1311, 4294901760
      %v1313 = vsub.f32 %v1311, %v1312
      %v1314 = vand.u32 %v1313, 4294901760
      %1315 = vmatpush.msra.mxu0 %v1314
      %v1316 = vand.u32 %v863, 4294901760
      %v1317 = vsub.f32 %v863, %v1316
      %v1318 = vand.u32 %v1317, 4294901760
      %v1319 = vsub.f32 %v1317, %v1318
      %v1320 = vand.u32 %v1319, 4294901760
      %1321 = vmatpush.msra.mxu0 %v1320
      %v1322 = vand.u32 %v862, 4294901760
      %v1323 = vsub.f32 %v862, %v1322
      %v1324 = vand.u32 %v1323, 4294901760
      %v1325 = vsub.f32 %v1323, %v1324
      %v1326 = vand.u32 %v1325, 4294901760
      %1327 = vmatpush.msra.mxu0 %v1326
      %v1328 = vand.u32 %v861, 4294901760
      %v1329 = vsub.f32 %v861, %v1328
      %v1330 = vand.u32 %v1329, 4294901760
      %v1331 = vsub.f32 %v1329, %v1330
      %v1332 = vand.u32 %v1331, 4294901760
      %1333 = vmatpush.msra.mxu0 %v1332
      %v1334 = vand.u32 %v860, 4294901760
      %v1335 = vsub.f32 %v860, %v1334
      %v1336 = vand.u32 %v1335, 4294901760
      %v1337 = vsub.f32 %v1335, %v1336
      %v1338 = vand.u32 %v1337, 4294901760
      %1339 = vmatpush.msra.mxu0 %v1338
      %v1340 = vand.u32 %v859, 4294901760
      %v1341 = vsub.f32 %v859, %v1340
      %v1342 = vand.u32 %v1341, 4294901760
      %v1343 = vsub.f32 %v1341, %v1342
      %v1344 = vand.u32 %v1343, 4294901760
      %1345 = vmatpush.msra.mxu0 %v1344
      %v1346 = vand.u32 %v858, 4294901760
      %v1347 = vsub.f32 %v858, %v1346
      %v1348 = vand.u32 %v1347, 4294901760
      %v1349 = vsub.f32 %v1347, %v1348
      %v1350 = vand.u32 %v1349, 4294901760
      %1351 = vmatpush.msra.mxu0 %v1350
      %v1352 = vand.u32 %v815, 4294901760
      %1353 = vmatmul.f32.gmra.mxu0 %v1352
      %v1354 = vpop.f32.mrf.mxu0
      %v1355 = vadd.f32 %v1254, %v1354
      %1356 = vdwg.mxu0
      %v1357 = vand.u32 %v873, 4294901760
      %v1358 = vsub.f32 %v873, %v1357
      %1359 = vmatpush.msra.mxu0 %v1358
      %v1360 = vand.u32 %v872, 4294901760
      %v1361 = vsub.f32 %v872, %v1360
      %1362 = vmatpush.msra.mxu0 %v1361
      %v1363 = vand.u32 %v871, 4294901760
      %v1364 = vsub.f32 %v871, %v1363
      %1365 = vmatpush.msra.mxu0 %v1364
      %v1366 = vand.u32 %v870, 4294901760
      %v1367 = vsub.f32 %v870, %v1366
      %1368 = vmatpush.msra.mxu0 %v1367
      %v1369 = vand.u32 %v869, 4294901760
      %v1370 = vsub.f32 %v869, %v1369
      %1371 = vmatpush.msra.mxu0 %v1370
      %v1372 = vand.u32 %v868, 4294901760
      %v1373 = vsub.f32 %v868, %v1372
      %1374 = vmatpush.msra.mxu0 %v1373
      %v1375 = vand.u32 %v867, 4294901760
      %v1376 = vsub.f32 %v867, %v1375
      %1377 = vmatpush.msra.mxu0 %v1376
      %v1378 = vand.u32 %v866, 4294901760
      %v1379 = vsub.f32 %v866, %v1378
      %1380 = vmatpush.msra.mxu0 %v1379
      %v1381 = vand.u32 %v865, 4294901760
      %v1382 = vsub.f32 %v865, %v1381
      %1383 = vmatpush.msra.mxu0 %v1382
      %v1384 = vand.u32 %v864, 4294901760
      %v1385 = vsub.f32 %v864, %v1384
      %1386 = vmatpush.msra.mxu0 %v1385
      %v1387 = vand.u32 %v863, 4294901760
      %v1388 = vsub.f32 %v863, %v1387
      %1389 = vmatpush.msra.mxu0 %v1388
      %v1390 = vand.u32 %v862, 4294901760
      %v1391 = vsub.f32 %v862, %v1390
      %1392 = vmatpush.msra.mxu0 %v1391
      %v1393 = vand.u32 %v861, 4294901760
      %v1394 = vsub.f32 %v861, %v1393
      %1395 = vmatpush.msra.mxu0 %v1394
      %v1396 = vand.u32 %v860, 4294901760
      %v1397 = vsub.f32 %v860, %v1396
      %1398 = vmatpush.msra.mxu0 %v1397
      %v1399 = vand.u32 %v859, 4294901760
      %v1400 = vsub.f32 %v859, %v1399
      %1401 = vmatpush.msra.mxu0 %v1400
      %v1402 = vand.u32 %v858, 4294901760
      %v1403 = vsub.f32 %v858, %v1402
      %1404 = vmatpush.msra.mxu0 %v1403
      %v1405 = vand.u32 %v815, 4294901760
      %v1406 = vsub.f32 %v815, %v1405
      %1407 = vmatmul.f32.gmra.mxu0 %v1406
      %v1408 = vpop.f32.mrf.mxu0
      %v1409 = vadd.f32 %v1355, %v1408
      %1410 = vdwg.mxu0
      %v1411 = vand.u32 %v873, 4294901760
      %1412 = vmatpush.msra.mxu0 %v1411
      %v1413 = vand.u32 %v872, 4294901760
      %1414 = vmatpush.msra.mxu0 %v1413
      %v1415 = vand.u32 %v871, 4294901760
      %1416 = vmatpush.msra.mxu0 %v1415
      %v1417 = vand.u32 %v870, 4294901760
      %1418 = vmatpush.msra.mxu0 %v1417
      %v1419 = vand.u32 %v869, 4294901760
      %1420 = vmatpush.msra.mxu0 %v1419
      %v1421 = vand.u32 %v868, 4294901760
      %1422 = vmatpush.msra.mxu0 %v1421
      %v1423 = vand.u32 %v867, 4294901760
      %1424 = vmatpush.msra.mxu0 %v1423
      %v1425 = vand.u32 %v866, 4294901760
      %1426 = vmatpush.msra.mxu0 %v1425
      %v1427 = vand.u32 %v865, 4294901760
      %1428 = vmatpush.msra.mxu0 %v1427
      %v1429 = vand.u32 %v864, 4294901760
      %1430 = vmatpush.msra.mxu0 %v1429
      %v1431 = vand.u32 %v863, 4294901760
      %1432 = vmatpush.msra.mxu0 %v1431
      %v1433 = vand.u32 %v862, 4294901760
      %1434 = vmatpush.msra.mxu0 %v1433
      %v1435 = vand.u32 %v861, 4294901760
      %1436 = vmatpush.msra.mxu0 %v1435
      %v1437 = vand.u32 %v860, 4294901760
      %1438 = vmatpush.msra.mxu0 %v1437
      %v1439 = vand.u32 %v859, 4294901760
      %1440 = vmatpush.msra.mxu0 %v1439
      %v1441 = vand.u32 %v858, 4294901760
      %1442 = vmatpush.msra.mxu0 %v1441
      %v1443 = vand.u32 %v815, 4294901760
      %v1444 = vsub.f32 %v815, %v1443
      %v1445 = vand.u32 %v1444, 4294901760
      %1446 = vmatmul.f32.gmra.mxu0 %v1445
      %v1447 = vpop.f32.mrf.mxu0
      %v1448 = vadd.f32 %v1409, %v1447
      %1449 = vdwg.mxu0
      %v1450 = vand.u32 %v873, 4294901760
      %v1451 = vsub.f32 %v873, %v1450
      %v1452 = vand.u32 %v1451, 4294901760
      %1453 = vmatpush.msra.mxu0 %v1452
      %v1454 = vand.u32 %v872, 4294901760
      %v1455 = vsub.f32 %v872, %v1454
      %v1456 = vand.u32 %v1455, 4294901760
      %1457 = vmatpush.msra.mxu0 %v1456
      %v1458 = vand.u32 %v871, 4294901760
      %v1459 = vsub.f32 %v871, %v1458
      %v1460 = vand.u32 %v1459, 4294901760
      %1461 = vmatpush.msra.mxu0 %v1460
      %v1462 = vand.u32 %v870, 4294901760
      %v1463 = vsub.f32 %v870, %v1462
      %v1464 = vand.u32 %v1463, 4294901760
      %1465 = vmatpush.msra.mxu0 %v1464
      %v1466 = vand.u32 %v869, 4294901760
      %v1467 = vsub.f32 %v869, %v1466
      %v1468 = vand.u32 %v1467, 4294901760
      %1469 = vmatpush.msra.mxu0 %v1468
      %v1470 = vand.u32 %v868, 4294901760
      %v1471 = vsub.f32 %v868, %v1470
      %v1472 = vand.u32 %v1471, 4294901760
      %1473 = vmatpush.msra.mxu0 %v1472
      %v1474 = vand.u32 %v867, 4294901760
      %v1475 = vsub.f32 %v867, %v1474
      %v1476 = vand.u32 %v1475, 4294901760
      %1477 = vmatpush.msra.mxu0 %v1476
      %v1478 = vand.u32 %v866, 4294901760
      %v1479 = vsub.f32 %v866, %v1478
      %v1480 = vand.u32 %v1479, 4294901760
      %1481 = vmatpush.msra.mxu0 %v1480
      %v1482 = vand.u32 %v865, 4294901760
      %v1483 = vsub.f32 %v865, %v1482
      %v1484 = vand.u32 %v1483, 4294901760
      %1485 = vmatpush.msra.mxu0 %v1484
      %v1486 = vand.u32 %v864, 4294901760
      %v1487 = vsub.f32 %v864, %v1486
      %v1488 = vand.u32 %v1487, 4294901760
      %1489 = vmatpush.msra.mxu0 %v1488
      %v1490 = vand.u32 %v863, 4294901760
      %v1491 = vsub.f32 %v863, %v1490
      %v1492 = vand.u32 %v1491, 4294901760
      %1493 = vmatpush.msra.mxu0 %v1492
      %v1494 = vand.u32 %v862, 4294901760
      %v1495 = vsub.f32 %v862, %v1494
      %v1496 = vand.u32 %v1495, 4294901760
      %1497 = vmatpush.msra.mxu0 %v1496
      %v1498 = vand.u32 %v861, 4294901760
      %v1499 = vsub.f32 %v861, %v1498
      %v1500 = vand.u32 %v1499, 4294901760
      %1501 = vmatpush.msra.mxu0 %v1500
      %v1502 = vand.u32 %v860, 4294901760
      %v1503 = vsub.f32 %v860, %v1502
      %v1504 = vand.u32 %v1503, 4294901760
      %1505 = vmatpush.msra.mxu0 %v1504
      %v1506 = vand.u32 %v859, 4294901760
      %v1507 = vsub.f32 %v859, %v1506
      %v1508 = vand.u32 %v1507, 4294901760
      %1509 = vmatpush.msra.mxu0 %v1508
      %v1510 = vand.u32 %v858, 4294901760
      %v1511 = vsub.f32 %v858, %v1510
      %v1512 = vand.u32 %v1511, 4294901760
      %1513 = vmatpush.msra.mxu0 %v1512
      %v1514 = vand.u32 %v815, 4294901760
      %1515 = vmatmul.f32.gmra.mxu0 %v1514
      %v1516 = vpop.f32.mrf.mxu0
      %v1517 = vadd.f32 %v1448, %v1516
      %1518 = vdwg.mxu0
      %v1519 = vand.u32 %v873, 4294901760
      %1520 = vmatpush.msra.mxu0 %v1519
      %v1521 = vand.u32 %v872, 4294901760
      %1522 = vmatpush.msra.mxu0 %v1521
      %v1523 = vand.u32 %v871, 4294901760
      %1524 = vmatpush.msra.mxu0 %v1523
      %v1525 = vand.u32 %v870, 4294901760
      %1526 = vmatpush.msra.mxu0 %v1525
      %v1527 = vand.u32 %v869, 4294901760
      %1528 = vmatpush.msra.mxu0 %v1527
      %v1529 = vand.u32 %v868, 4294901760
      %1530 = vmatpush.msra.mxu0 %v1529
      %v1531 = vand.u32 %v867, 4294901760
      %1532 = vmatpush.msra.mxu0 %v1531
      %v1533 = vand.u32 %v866, 4294901760
      %1534 = vmatpush.msra.mxu0 %v1533
      %v1535 = vand.u32 %v865, 4294901760
      %1536 = vmatpush.msra.mxu0 %v1535
      %v1537 = vand.u32 %v864, 4294901760
      %1538 = vmatpush.msra.mxu0 %v1537
      %v1539 = vand.u32 %v863, 4294901760
      %1540 = vmatpush.msra.mxu0 %v1539
      %v1541 = vand.u32 %v862, 4294901760
      %1542 = vmatpush.msra.mxu0 %v1541
      %v1543 = vand.u32 %v861, 4294901760
      %1544 = vmatpush.msra.mxu0 %v1543
      %v1545 = vand.u32 %v860, 4294901760
      %1546 = vmatpush.msra.mxu0 %v1545
      %v1547 = vand.u32 %v859, 4294901760
      %1548 = vmatpush.msra.mxu0 %v1547
      %v1549 = vand.u32 %v858, 4294901760
      %1550 = vmatpush.msra.mxu0 %v1549
      %v1551 = vand.u32 %v815, 4294901760
      %1552 = vmatmul.f32.gmra.mxu0 %v1551
      %v1553 = vpop.f32.mrf.mxu0
      %v1554 = vadd.f32 %v1517, %v1553
      %1555 = vdwg.mxu0
      %v1556 = vand.u32 %v857, 4294901760
      %1557 = vmatpush.msra.mxu0 %v1556
      %v1558 = vand.u32 %v856, 4294901760
      %1559 = vmatpush.msra.mxu0 %v1558
      %v1560 = vand.u32 %v855, 4294901760
      %1561 = vmatpush.msra.mxu0 %v1560
      %v1562 = vand.u32 %v854, 4294901760
      %1563 = vmatpush.msra.mxu0 %v1562
      %v1564 = vand.u32 %v853, 4294901760
      %1565 = vmatpush.msra.mxu0 %v1564
      %v1566 = vand.u32 %v852, 4294901760
      %1567 = vmatpush.msra.mxu0 %v1566
      %v1568 = vand.u32 %v851, 4294901760
      %1569 = vmatpush.msra.mxu0 %v1568
      %v1570 = vand.u32 %v850, 4294901760
      %1571 = vmatpush.msra.mxu0 %v1570
      %v1572 = vand.u32 %v849, 4294901760
      %1573 = vmatpush.msra.mxu0 %v1572
      %v1574 = vand.u32 %v848, 4294901760
      %1575 = vmatpush.msra.mxu0 %v1574
      %v1576 = vand.u32 %v847, 4294901760
      %1577 = vmatpush.msra.mxu0 %v1576
      %v1578 = vand.u32 %v846, 4294901760
      %1579 = vmatpush.msra.mxu0 %v1578
      %v1580 = vand.u32 %v845, 4294901760
      %1581 = vmatpush.msra.mxu0 %v1580
      %v1582 = vand.u32 %v844, 4294901760
      %1583 = vmatpush.msra.mxu0 %v1582
      %v1584 = vand.u32 %v843, 4294901760
      %1585 = vmatpush.msra.mxu0 %v1584
      %v1586 = vand.u32 %v842, 4294901760
      %1587 = vmatpush.msra.mxu0 %v1586
      %v1588 = vand.u32 %v832, 4294901760
      %v1589 = vsub.f32 %v832, %v1588
      %v1590 = vand.u32 %v1589, 4294901760
      %v1591 = vsub.f32 %v1589, %v1590
      %v1592 = vand.u32 %v1591, 4294901760
      %1593 = vmatmul.f32.gmra.mxu0 %v1592
      %v1594 = vpop.f32.mrf.mxu0
      %v1595 = vadd.f32 0.0, %v1594
      %1596 = vdwg.mxu0
      %v1597 = vand.u32 %v857, 4294901760
      %v1598 = vsub.f32 %v857, %v1597
      %v1599 = vand.u32 %v1598, 4294901760
      %v1600 = vsub.f32 %v1598, %v1599
      %v1601 = vand.u32 %v1600, 4294901760
      %1602 = vmatpush.msra.mxu0 %v1601
      %v1603 = vand.u32 %v856, 4294901760
      %v1604 = vsub.f32 %v856, %v1603
      %v1605 = vand.u32 %v1604, 4294901760
      %v1606 = vsub.f32 %v1604, %v1605
      %v1607 = vand.u32 %v1606, 4294901760
      %1608 = vmatpush.msra.mxu0 %v1607
      %v1609 = vand.u32 %v855, 4294901760
      %v1610 = vsub.f32 %v855, %v1609
      %v1611 = vand.u32 %v1610, 4294901760
      %v1612 = vsub.f32 %v1610, %v1611
      %v1613 = vand.u32 %v1612, 4294901760
      %1614 = vmatpush.msra.mxu0 %v1613
      %v1615 = vand.u32 %v854, 4294901760
      %v1616 = vsub.f32 %v854, %v1615
      %v1617 = vand.u32 %v1616, 4294901760
      %v1618 = vsub.f32 %v1616, %v1617
      %v1619 = vand.u32 %v1618, 4294901760
      %1620 = vmatpush.msra.mxu0 %v1619
      %v1621 = vand.u32 %v853, 4294901760
      %v1622 = vsub.f32 %v853, %v1621
      %v1623 = vand.u32 %v1622, 4294901760
      %v1624 = vsub.f32 %v1622, %v1623
      %v1625 = vand.u32 %v1624, 4294901760
      %1626 = vmatpush.msra.mxu0 %v1625
      %v1627 = vand.u32 %v852, 4294901760
      %v1628 = vsub.f32 %v852, %v1627
      %v1629 = vand.u32 %v1628, 4294901760
      %v1630 = vsub.f32 %v1628, %v1629
      %v1631 = vand.u32 %v1630, 4294901760
      %1632 = vmatpush.msra.mxu0 %v1631
      %v1633 = vand.u32 %v851, 4294901760
      %v1634 = vsub.f32 %v851, %v1633
      %v1635 = vand.u32 %v1634, 4294901760
      %v1636 = vsub.f32 %v1634, %v1635
      %v1637 = vand.u32 %v1636, 4294901760
      %1638 = vmatpush.msra.mxu0 %v1637
      %v1639 = vand.u32 %v850, 4294901760
      %v1640 = vsub.f32 %v850, %v1639
      %v1641 = vand.u32 %v1640, 4294901760
      %v1642 = vsub.f32 %v1640, %v1641
      %v1643 = vand.u32 %v1642, 4294901760
      %1644 = vmatpush.msra.mxu0 %v1643
      %v1645 = vand.u32 %v849, 4294901760
      %v1646 = vsub.f32 %v849, %v1645
      %v1647 = vand.u32 %v1646, 4294901760
      %v1648 = vsub.f32 %v1646, %v1647
      %v1649 = vand.u32 %v1648, 4294901760
      %1650 = vmatpush.msra.mxu0 %v1649
      %v1651 = vand.u32 %v848, 4294901760
      %v1652 = vsub.f32 %v848, %v1651
      %v1653 = vand.u32 %v1652, 4294901760
      %v1654 = vsub.f32 %v1652, %v1653
      %v1655 = vand.u32 %v1654, 4294901760
      %1656 = vmatpush.msra.mxu0 %v1655
      %v1657 = vand.u32 %v847, 4294901760
      %v1658 = vsub.f32 %v847, %v1657
      %v1659 = vand.u32 %v1658, 4294901760
      %v1660 = vsub.f32 %v1658, %v1659
      %v1661 = vand.u32 %v1660, 4294901760
      %1662 = vmatpush.msra.mxu0 %v1661
      %v1663 = vand.u32 %v846, 4294901760
      %v1664 = vsub.f32 %v846, %v1663
      %v1665 = vand.u32 %v1664, 4294901760
      %v1666 = vsub.f32 %v1664, %v1665
      %v1667 = vand.u32 %v1666, 4294901760
      %1668 = vmatpush.msra.mxu0 %v1667
      %v1669 = vand.u32 %v845, 4294901760
      %v1670 = vsub.f32 %v845, %v1669
      %v1671 = vand.u32 %v1670, 4294901760
      %v1672 = vsub.f32 %v1670, %v1671
      %v1673 = vand.u32 %v1672, 4294901760
      %1674 = vmatpush.msra.mxu0 %v1673
      %v1675 = vand.u32 %v844, 4294901760
      %v1676 = vsub.f32 %v844, %v1675
      %v1677 = vand.u32 %v1676, 4294901760
      %v1678 = vsub.f32 %v1676, %v1677
      %v1679 = vand.u32 %v1678, 4294901760
      %1680 = vmatpush.msra.mxu0 %v1679
      %v1681 = vand.u32 %v843, 4294901760
      %v1682 = vsub.f32 %v843, %v1681
      %v1683 = vand.u32 %v1682, 4294901760
      %v1684 = vsub.f32 %v1682, %v1683
      %v1685 = vand.u32 %v1684, 4294901760
      %1686 = vmatpush.msra.mxu0 %v1685
      %v1687 = vand.u32 %v842, 4294901760
      %v1688 = vsub.f32 %v842, %v1687
      %v1689 = vand.u32 %v1688, 4294901760
      %v1690 = vsub.f32 %v1688, %v1689
      %v1691 = vand.u32 %v1690, 4294901760
      %1692 = vmatpush.msra.mxu0 %v1691
      %v1693 = vand.u32 %v832, 4294901760
      %1694 = vmatmul.f32.gmra.mxu0 %v1693
      %v1695 = vpop.f32.mrf.mxu0
      %v1696 = vadd.f32 %v1595, %v1695
      %1697 = vdwg.mxu0
      %v1698 = vand.u32 %v857, 4294901760
      %v1699 = vsub.f32 %v857, %v1698
      %1700 = vmatpush.msra.mxu0 %v1699
      %v1701 = vand.u32 %v856, 4294901760
      %v1702 = vsub.f32 %v856, %v1701
      %1703 = vmatpush.msra.mxu0 %v1702
      %v1704 = vand.u32 %v855, 4294901760
      %v1705 = vsub.f32 %v855, %v1704
      %1706 = vmatpush.msra.mxu0 %v1705
      %v1707 = vand.u32 %v854, 4294901760
      %v1708 = vsub.f32 %v854, %v1707
      %1709 = vmatpush.msra.mxu0 %v1708
      %v1710 = vand.u32 %v853, 4294901760
      %v1711 = vsub.f32 %v853, %v1710
      %1712 = vmatpush.msra.mxu0 %v1711
      %v1713 = vand.u32 %v852, 4294901760
      %v1714 = vsub.f32 %v852, %v1713
      %1715 = vmatpush.msra.mxu0 %v1714
      %v1716 = vand.u32 %v851, 4294901760
      %v1717 = vsub.f32 %v851, %v1716
      %1718 = vmatpush.msra.mxu0 %v1717
      %v1719 = vand.u32 %v850, 4294901760
      %v1720 = vsub.f32 %v850, %v1719
      %1721 = vmatpush.msra.mxu0 %v1720
      %v1722 = vand.u32 %v849, 4294901760
      %v1723 = vsub.f32 %v849, %v1722
      %1724 = vmatpush.msra.mxu0 %v1723
      %v1725 = vand.u32 %v848, 4294901760
      %v1726 = vsub.f32 %v848, %v1725
      %1727 = vmatpush.msra.mxu0 %v1726
      %v1728 = vand.u32 %v847, 4294901760
      %v1729 = vsub.f32 %v847, %v1728
      %1730 = vmatpush.msra.mxu0 %v1729
      %v1731 = vand.u32 %v846, 4294901760
      %v1732 = vsub.f32 %v846, %v1731
      %1733 = vmatpush.msra.mxu0 %v1732
      %v1734 = vand.u32 %v845, 4294901760
      %v1735 = vsub.f32 %v845, %v1734
      %1736 = vmatpush.msra.mxu0 %v1735
      %v1737 = vand.u32 %v844, 4294901760
      %v1738 = vsub.f32 %v844, %v1737
      %1739 = vmatpush.msra.mxu0 %v1738
      %v1740 = vand.u32 %v843, 4294901760
      %v1741 = vsub.f32 %v843, %v1740
      %1742 = vmatpush.msra.mxu0 %v1741
      %v1743 = vand.u32 %v842, 4294901760
      %v1744 = vsub.f32 %v842, %v1743
      %1745 = vmatpush.msra.mxu0 %v1744
      %v1746 = vand.u32 %v832, 4294901760
      %v1747 = vsub.f32 %v832, %v1746
      %1748 = vmatmul.f32.gmra.mxu0 %v1747
      %v1749 = vpop.f32.mrf.mxu0
      %v1750 = vadd.f32 %v1696, %v1749
      %1751 = vdwg.mxu0
      %v1752 = vand.u32 %v857, 4294901760
      %1753 = vmatpush.msra.mxu0 %v1752
      %v1754 = vand.u32 %v856, 4294901760
      %1755 = vmatpush.msra.mxu0 %v1754
      %v1756 = vand.u32 %v855, 4294901760
      %1757 = vmatpush.msra.mxu0 %v1756
      %v1758 = vand.u32 %v854, 4294901760
      %1759 = vmatpush.msra.mxu0 %v1758
      %v1760 = vand.u32 %v853, 4294901760
      %1761 = vmatpush.msra.mxu0 %v1760
      %v1762 = vand.u32 %v852, 4294901760
      %1763 = vmatpush.msra.mxu0 %v1762
      %v1764 = vand.u32 %v851, 4294901760
      %1765 = vmatpush.msra.mxu0 %v1764
      %v1766 = vand.u32 %v850, 4294901760
      %1767 = vmatpush.msra.mxu0 %v1766
      %v1768 = vand.u32 %v849, 4294901760
      %1769 = vmatpush.msra.mxu0 %v1768
      %v1770 = vand.u32 %v848, 4294901760
      %1771 = vmatpush.msra.mxu0 %v1770
      %v1772 = vand.u32 %v847, 4294901760
      %1773 = vmatpush.msra.mxu0 %v1772
      %v1774 = vand.u32 %v846, 4294901760
      %1775 = vmatpush.msra.mxu0 %v1774
      %v1776 = vand.u32 %v845, 4294901760
      %1777 = vmatpush.msra.mxu0 %v1776
      %v1778 = vand.u32 %v844, 4294901760
      %1779 = vmatpush.msra.mxu0 %v1778
      %v1780 = vand.u32 %v843, 4294901760
      %1781 = vmatpush.msra.mxu0 %v1780
      %v1782 = vand.u32 %v842, 4294901760
      %1783 = vmatpush.msra.mxu0 %v1782
      %v1784 = vand.u32 %v832, 4294901760
      %v1785 = vsub.f32 %v832, %v1784
      %v1786 = vand.u32 %v1785, 4294901760
      %1787 = vmatmul.f32.gmra.mxu0 %v1786
      %v1788 = vpop.f32.mrf.mxu0
      %v1789 = vadd.f32 %v1750, %v1788
      %1790 = vdwg.mxu0
      %v1791 = vand.u32 %v857, 4294901760
      %v1792 = vsub.f32 %v857, %v1791
      %v1793 = vand.u32 %v1792, 4294901760
      %1794 = vmatpush.msra.mxu0 %v1793
      %v1795 = vand.u32 %v856, 4294901760
      %v1796 = vsub.f32 %v856, %v1795
      %v1797 = vand.u32 %v1796, 4294901760
      %1798 = vmatpush.msra.mxu0 %v1797
      %v1799 = vand.u32 %v855, 4294901760
      %v1800 = vsub.f32 %v855, %v1799
      %v1801 = vand.u32 %v1800, 4294901760
      %1802 = vmatpush.msra.mxu0 %v1801
      %v1803 = vand.u32 %v854, 4294901760
      %v1804 = vsub.f32 %v854, %v1803
      %v1805 = vand.u32 %v1804, 4294901760
      %1806 = vmatpush.msra.mxu0 %v1805
      %v1807 = vand.u32 %v853, 4294901760
      %v1808 = vsub.f32 %v853, %v1807
      %v1809 = vand.u32 %v1808, 4294901760
      %1810 = vmatpush.msra.mxu0 %v1809
      %v1811 = vand.u32 %v852, 4294901760
      %v1812 = vsub.f32 %v852, %v1811
      %v1813 = vand.u32 %v1812, 4294901760
      %1814 = vmatpush.msra.mxu0 %v1813
      %v1815 = vand.u32 %v851, 4294901760
      %v1816 = vsub.f32 %v851, %v1815
      %v1817 = vand.u32 %v1816, 4294901760
      %1818 = vmatpush.msra.mxu0 %v1817
      %v1819 = vand.u32 %v850, 4294901760
      %v1820 = vsub.f32 %v850, %v1819
      %v1821 = vand.u32 %v1820, 4294901760
      %1822 = vmatpush.msra.mxu0 %v1821
      %v1823 = vand.u32 %v849, 4294901760
      %v1824 = vsub.f32 %v849, %v1823
      %v1825 = vand.u32 %v1824, 4294901760
      %1826 = vmatpush.msra.mxu0 %v1825
      %v1827 = vand.u32 %v848, 4294901760
      %v1828 = vsub.f32 %v848, %v1827
      %v1829 = vand.u32 %v1828, 4294901760
      %1830 = vmatpush.msra.mxu0 %v1829
      %v1831 = vand.u32 %v847, 4294901760
      %v1832 = vsub.f32 %v847, %v1831
      %v1833 = vand.u32 %v1832, 4294901760
      %1834 = vmatpush.msra.mxu0 %v1833
      %v1835 = vand.u32 %v846, 4294901760
      %v1836 = vsub.f32 %v846, %v1835
      %v1837 = vand.u32 %v1836, 4294901760
      %1838 = vmatpush.msra.mxu0 %v1837
      %v1839 = vand.u32 %v845, 4294901760
      %v1840 = vsub.f32 %v845, %v1839
      %v1841 = vand.u32 %v1840, 4294901760
      %1842 = vmatpush.msra.mxu0 %v1841
      %v1843 = vand.u32 %v844, 4294901760
      %v1844 = vsub.f32 %v844, %v1843
      %v1845 = vand.u32 %v1844, 4294901760
      %1846 = vmatpush.msra.mxu0 %v1845
      %v1847 = vand.u32 %v843, 4294901760
      %v1848 = vsub.f32 %v843, %v1847
      %v1849 = vand.u32 %v1848, 4294901760
      %1850 = vmatpush.msra.mxu0 %v1849
      %v1851 = vand.u32 %v842, 4294901760
      %v1852 = vsub.f32 %v842, %v1851
      %v1853 = vand.u32 %v1852, 4294901760
      %1854 = vmatpush.msra.mxu0 %v1853
      %v1855 = vand.u32 %v832, 4294901760
      %1856 = vmatmul.f32.gmra.mxu0 %v1855
      %v1857 = vpop.f32.mrf.mxu0
      %v1858 = vadd.f32 %v1789, %v1857
      %1859 = vdwg.mxu0
      %v1860 = vand.u32 %v857, 4294901760
      %1861 = vmatpush.msra.mxu0 %v1860
      %v1862 = vand.u32 %v856, 4294901760
      %1863 = vmatpush.msra.mxu0 %v1862
      %v1864 = vand.u32 %v855, 4294901760
      %1865 = vmatpush.msra.mxu0 %v1864
      %v1866 = vand.u32 %v854, 4294901760
      %1867 = vmatpush.msra.mxu0 %v1866
      %v1868 = vand.u32 %v853, 4294901760
      %1869 = vmatpush.msra.mxu0 %v1868
      %v1870 = vand.u32 %v852, 4294901760
      %1871 = vmatpush.msra.mxu0 %v1870
      %v1872 = vand.u32 %v851, 4294901760
      %1873 = vmatpush.msra.mxu0 %v1872
      %v1874 = vand.u32 %v850, 4294901760
      %1875 = vmatpush.msra.mxu0 %v1874
      %v1876 = vand.u32 %v849, 4294901760
      %1877 = vmatpush.msra.mxu0 %v1876
      %v1878 = vand.u32 %v848, 4294901760
      %1879 = vmatpush.msra.mxu0 %v1878
      %v1880 = vand.u32 %v847, 4294901760
      %1881 = vmatpush.msra.mxu0 %v1880
      %v1882 = vand.u32 %v846, 4294901760
      %1883 = vmatpush.msra.mxu0 %v1882
      %v1884 = vand.u32 %v845, 4294901760
      %1885 = vmatpush.msra.mxu0 %v1884
      %v1886 = vand.u32 %v844, 4294901760
      %1887 = vmatpush.msra.mxu0 %v1886
      %v1888 = vand.u32 %v843, 4294901760
      %1889 = vmatpush.msra.mxu0 %v1888
      %v1890 = vand.u32 %v842, 4294901760
      %1891 = vmatpush.msra.mxu0 %v1890
      %v1892 = vand.u32 %v832, 4294901760
      %1893 = vmatmul.f32.gmra.mxu0 %v1892
      %v1894 = vpop.f32.mrf.mxu0
      %v1895 = vadd.f32 %v1858, %v1894
      %1896 = vdwg.mxu0
      %v1897 = vand.u32 %v873, 4294901760
      %1898 = vmatpush.msra.mxu0 %v1897
      %v1899 = vand.u32 %v872, 4294901760
      %1900 = vmatpush.msra.mxu0 %v1899
      %v1901 = vand.u32 %v871, 4294901760
      %1902 = vmatpush.msra.mxu0 %v1901
      %v1903 = vand.u32 %v870, 4294901760
      %1904 = vmatpush.msra.mxu0 %v1903
      %v1905 = vand.u32 %v869, 4294901760
      %1906 = vmatpush.msra.mxu0 %v1905
      %v1907 = vand.u32 %v868, 4294901760
      %1908 = vmatpush.msra.mxu0 %v1907
      %v1909 = vand.u32 %v867, 4294901760
      %1910 = vmatpush.msra.mxu0 %v1909
      %v1911 = vand.u32 %v866, 4294901760
      %1912 = vmatpush.msra.mxu0 %v1911
      %v1913 = vand.u32 %v865, 4294901760
      %1914 = vmatpush.msra.mxu0 %v1913
      %v1915 = vand.u32 %v864, 4294901760
      %1916 = vmatpush.msra.mxu0 %v1915
      %v1917 = vand.u32 %v863, 4294901760
      %1918 = vmatpush.msra.mxu0 %v1917
      %v1919 = vand.u32 %v862, 4294901760
      %1920 = vmatpush.msra.mxu0 %v1919
      %v1921 = vand.u32 %v861, 4294901760
      %1922 = vmatpush.msra.mxu0 %v1921
      %v1923 = vand.u32 %v860, 4294901760
      %1924 = vmatpush.msra.mxu0 %v1923
      %v1925 = vand.u32 %v859, 4294901760
      %1926 = vmatpush.msra.mxu0 %v1925
      %v1927 = vand.u32 %v858, 4294901760
      %1928 = vmatpush.msra.mxu0 %v1927
      %v1929 = vand.u32 %v841, 4294901760
      %v1930 = vsub.f32 %v841, %v1929
      %v1931 = vand.u32 %v1930, 4294901760
      %v1932 = vsub.f32 %v1930, %v1931
      %v1933 = vand.u32 %v1932, 4294901760
      %1934 = vmatmul.f32.gmra.mxu0 %v1933
      %v1935 = vpop.f32.mrf.mxu0
      %v1936 = vadd.f32 %v1895, %v1935
      %1937 = vdwg.mxu0
      %v1938 = vand.u32 %v873, 4294901760
      %v1939 = vsub.f32 %v873, %v1938
      %v1940 = vand.u32 %v1939, 4294901760
      %v1941 = vsub.f32 %v1939, %v1940
      %v1942 = vand.u32 %v1941, 4294901760
      %1943 = vmatpush.msra.mxu0 %v1942
      %v1944 = vand.u32 %v872, 4294901760
      %v1945 = vsub.f32 %v872, %v1944
      %v1946 = vand.u32 %v1945, 4294901760
      %v1947 = vsub.f32 %v1945, %v1946
      %v1948 = vand.u32 %v1947, 4294901760
      %1949 = vmatpush.msra.mxu0 %v1948
      %v1950 = vand.u32 %v871, 4294901760
      %v1951 = vsub.f32 %v871, %v1950
      %v1952 = vand.u32 %v1951, 4294901760
      %v1953 = vsub.f32 %v1951, %v1952
      %v1954 = vand.u32 %v1953, 4294901760
      %1955 = vmatpush.msra.mxu0 %v1954
      %v1956 = vand.u32 %v870, 4294901760
      %v1957 = vsub.f32 %v870, %v1956
      %v1958 = vand.u32 %v1957, 4294901760
      %v1959 = vsub.f32 %v1957, %v1958
      %v1960 = vand.u32 %v1959, 4294901760
      %1961 = vmatpush.msra.mxu0 %v1960
      %v1962 = vand.u32 %v869, 4294901760
      %v1963 = vsub.f32 %v869, %v1962
      %v1964 = vand.u32 %v1963, 4294901760
      %v1965 = vsub.f32 %v1963, %v1964
      %v1966 = vand.u32 %v1965, 4294901760
      %1967 = vmatpush.msra.mxu0 %v1966
      %v1968 = vand.u32 %v868, 4294901760
      %v1969 = vsub.f32 %v868, %v1968
      %v1970 = vand.u32 %v1969, 4294901760
      %v1971 = vsub.f32 %v1969, %v1970
      %v1972 = vand.u32 %v1971, 4294901760
      %1973 = vmatpush.msra.mxu0 %v1972
      %v1974 = vand.u32 %v867, 4294901760
      %v1975 = vsub.f32 %v867, %v1974
      %v1976 = vand.u32 %v1975, 4294901760
      %v1977 = vsub.f32 %v1975, %v1976
      %v1978 = vand.u32 %v1977, 4294901760
      %1979 = vmatpush.msra.mxu0 %v1978
      %v1980 = vand.u32 %v866, 4294901760
      %v1981 = vsub.f32 %v866, %v1980
      %v1982 = vand.u32 %v1981, 4294901760
      %v1983 = vsub.f32 %v1981, %v1982
      %v1984 = vand.u32 %v1983, 4294901760
      %1985 = vmatpush.msra.mxu0 %v1984
      %v1986 = vand.u32 %v865, 4294901760
      %v1987 = vsub.f32 %v865, %v1986
      %v1988 = vand.u32 %v1987, 4294901760
      %v1989 = vsub.f32 %v1987, %v1988
      %v1990 = vand.u32 %v1989, 4294901760
      %1991 = vmatpush.msra.mxu0 %v1990
      %v1992 = vand.u32 %v864, 4294901760
      %v1993 = vsub.f32 %v864, %v1992
      %v1994 = vand.u32 %v1993, 4294901760
      %v1995 = vsub.f32 %v1993, %v1994
      %v1996 = vand.u32 %v1995, 4294901760
      %1997 = vmatpush.msra.mxu0 %v1996
      %v1998 = vand.u32 %v863, 4294901760
      %v1999 = vsub.f32 %v863, %v1998
      %v2000 = vand.u32 %v1999, 4294901760
      %v2001 = vsub.f32 %v1999, %v2000
      %v2002 = vand.u32 %v2001, 4294901760
      %2003 = vmatpush.msra.mxu0 %v2002
      %v2004 = vand.u32 %v862, 4294901760
      %v2005 = vsub.f32 %v862, %v2004
      %v2006 = vand.u32 %v2005, 4294901760
      %v2007 = vsub.f32 %v2005, %v2006
      %v2008 = vand.u32 %v2007, 4294901760
      %2009 = vmatpush.msra.mxu0 %v2008
      %v2010 = vand.u32 %v861, 4294901760
      %v2011 = vsub.f32 %v861, %v2010
      %v2012 = vand.u32 %v2011, 4294901760
      %v2013 = vsub.f32 %v2011, %v2012
      %v2014 = vand.u32 %v2013, 4294901760
      %2015 = vmatpush.msra.mxu0 %v2014
      %v2016 = vand.u32 %v860, 4294901760
      %v2017 = vsub.f32 %v860, %v2016
      %v2018 = vand.u32 %v2017, 4294901760
      %v2019 = vsub.f32 %v2017, %v2018
      %v2020 = vand.u32 %v2019, 4294901760
      %2021 = vmatpush.msra.mxu0 %v2020
      %v2022 = vand.u32 %v859, 4294901760
      %v2023 = vsub.f32 %v859, %v2022
      %v2024 = vand.u32 %v2023, 4294901760
      %v2025 = vsub.f32 %v2023, %v2024
      %v2026 = vand.u32 %v2025, 4294901760
      %2027 = vmatpush.msra.mxu0 %v2026
      %v2028 = vand.u32 %v858, 4294901760
      %v2029 = vsub.f32 %v858, %v2028
      %v2030 = vand.u32 %v2029, 4294901760
      %v2031 = vsub.f32 %v2029, %v2030
      %v2032 = vand.u32 %v2031, 4294901760
      %2033 = vmatpush.msra.mxu0 %v2032
      %v2034 = vand.u32 %v841, 4294901760
      %2035 = vmatmul.f32.gmra.mxu0 %v2034
      %v2036 = vpop.f32.mrf.mxu0
      %v2037 = vadd.f32 %v1936, %v2036
      %2038 = vdwg.mxu0
      %v2039 = vand.u32 %v873, 4294901760
      %v2040 = vsub.f32 %v873, %v2039
      %2041 = vmatpush.msra.mxu0 %v2040
      %v2042 = vand.u32 %v872, 4294901760
      %v2043 = vsub.f32 %v872, %v2042
      %2044 = vmatpush.msra.mxu0 %v2043
      %v2045 = vand.u32 %v871, 4294901760
      %v2046 = vsub.f32 %v871, %v2045
      %2047 = vmatpush.msra.mxu0 %v2046
      %v2048 = vand.u32 %v870, 4294901760
      %v2049 = vsub.f32 %v870, %v2048
      %2050 = vmatpush.msra.mxu0 %v2049
      %v2051 = vand.u32 %v869, 4294901760
      %v2052 = vsub.f32 %v869, %v2051
      %2053 = vmatpush.msra.mxu0 %v2052
      %v2054 = vand.u32 %v868, 4294901760
      %v2055 = vsub.f32 %v868, %v2054
      %2056 = vmatpush.msra.mxu0 %v2055
      %v2057 = vand.u32 %v867, 4294901760
      %v2058 = vsub.f32 %v867, %v2057
      %2059 = vmatpush.msra.mxu0 %v2058
      %v2060 = vand.u32 %v866, 4294901760
      %v2061 = vsub.f32 %v866, %v2060
      %2062 = vmatpush.msra.mxu0 %v2061
      %v2063 = vand.u32 %v865, 4294901760
      %v2064 = vsub.f32 %v865, %v2063
      %2065 = vmatpush.msra.mxu0 %v2064
      %v2066 = vand.u32 %v864, 4294901760
      %v2067 = vsub.f32 %v864, %v2066
      %2068 = vmatpush.msra.mxu0 %v2067
      %v2069 = vand.u32 %v863, 4294901760
      %v2070 = vsub.f32 %v863, %v2069
      %2071 = vmatpush.msra.mxu0 %v2070
      %v2072 = vand.u32 %v862, 4294901760
      %v2073 = vsub.f32 %v862, %v2072
      %2074 = vmatpush.msra.mxu0 %v2073
      %v2075 = vand.u32 %v861, 4294901760
      %v2076 = vsub.f32 %v861, %v2075
      %2077 = vmatpush.msra.mxu0 %v2076
      %v2078 = vand.u32 %v860, 4294901760
      %v2079 = vsub.f32 %v860, %v2078
      %2080 = vmatpush.msra.mxu0 %v2079
      %v2081 = vand.u32 %v859, 4294901760
      %v2082 = vsub.f32 %v859, %v2081
      %2083 = vmatpush.msra.mxu0 %v2082
      %v2084 = vand.u32 %v858, 4294901760
      %v2085 = vsub.f32 %v858, %v2084
      %2086 = vmatpush.msra.mxu0 %v2085
      %v2087 = vand.u32 %v841, 4294901760
      %v2088 = vsub.f32 %v841, %v2087
      %2089 = vmatmul.f32.gmra.mxu0 %v2088
      %v2090 = vpop.f32.mrf.mxu0
      %v2091 = vadd.f32 %v2037, %v2090
      %2092 = vdwg.mxu0
      %v2093 = vand.u32 %v873, 4294901760
      %2094 = vmatpush.msra.mxu0 %v2093
      %v2095 = vand.u32 %v872, 4294901760
      %2096 = vmatpush.msra.mxu0 %v2095
      %v2097 = vand.u32 %v871, 4294901760
      %2098 = vmatpush.msra.mxu0 %v2097
      %v2099 = vand.u32 %v870, 4294901760
      %2100 = vmatpush.msra.mxu0 %v2099
      %v2101 = vand.u32 %v869, 4294901760
      %2102 = vmatpush.msra.mxu0 %v2101
      %v2103 = vand.u32 %v868, 4294901760
      %2104 = vmatpush.msra.mxu0 %v2103
      %v2105 = vand.u32 %v867, 4294901760
      %2106 = vmatpush.msra.mxu0 %v2105
      %v2107 = vand.u32 %v866, 4294901760
      %2108 = vmatpush.msra.mxu0 %v2107
      %v2109 = vand.u32 %v865, 4294901760
      %2110 = vmatpush.msra.mxu0 %v2109
      %v2111 = vand.u32 %v864, 4294901760
      %2112 = vmatpush.msra.mxu0 %v2111
      %v2113 = vand.u32 %v863, 4294901760
      %2114 = vmatpush.msra.mxu0 %v2113
      %v2115 = vand.u32 %v862, 4294901760
      %2116 = vmatpush.msra.mxu0 %v2115
      %v2117 = vand.u32 %v861, 4294901760
      %2118 = vmatpush.msra.mxu0 %v2117
      %v2119 = vand.u32 %v860, 4294901760
      %2120 = vmatpush.msra.mxu0 %v2119
      %v2121 = vand.u32 %v859, 4294901760
      %2122 = vmatpush.msra.mxu0 %v2121
      %v2123 = vand.u32 %v858, 4294901760
      %2124 = vmatpush.msra.mxu0 %v2123
      %v2125 = vand.u32 %v841, 4294901760
      %v2126 = vsub.f32 %v841, %v2125
      %v2127 = vand.u32 %v2126, 4294901760
      %2128 = vmatmul.f32.gmra.mxu0 %v2127
      %v2129 = vpop.f32.mrf.mxu0
      %v2130 = vadd.f32 %v2091, %v2129
      %2131 = vdwg.mxu0
      %v2132 = vand.u32 %v873, 4294901760
      %v2133 = vsub.f32 %v873, %v2132
      %v2134 = vand.u32 %v2133, 4294901760
      %2135 = vmatpush.msra.mxu0 %v2134
      %v2136 = vand.u32 %v872, 4294901760
      %v2137 = vsub.f32 %v872, %v2136
      %v2138 = vand.u32 %v2137, 4294901760
      %2139 = vmatpush.msra.mxu0 %v2138
      %v2140 = vand.u32 %v871, 4294901760
      %v2141 = vsub.f32 %v871, %v2140
      %v2142 = vand.u32 %v2141, 4294901760
      %2143 = vmatpush.msra.mxu0 %v2142
      %v2144 = vand.u32 %v870, 4294901760
      %v2145 = vsub.f32 %v870, %v2144
      %v2146 = vand.u32 %v2145, 4294901760
      %2147 = vmatpush.msra.mxu0 %v2146
      %v2148 = vand.u32 %v869, 4294901760
      %v2149 = vsub.f32 %v869, %v2148
      %v2150 = vand.u32 %v2149, 4294901760
      %2151 = vmatpush.msra.mxu0 %v2150
      %v2152 = vand.u32 %v868, 4294901760
      %v2153 = vsub.f32 %v868, %v2152
      %v2154 = vand.u32 %v2153, 4294901760
      %2155 = vmatpush.msra.mxu0 %v2154
      %v2156 = vand.u32 %v867, 4294901760
      %v2157 = vsub.f32 %v867, %v2156
      %v2158 = vand.u32 %v2157, 4294901760
      %2159 = vmatpush.msra.mxu0 %v2158
      %v2160 = vand.u32 %v866, 4294901760
      %v2161 = vsub.f32 %v866, %v2160
      %v2162 = vand.u32 %v2161, 4294901760
      %2163 = vmatpush.msra.mxu0 %v2162
      %v2164 = vand.u32 %v865, 4294901760
      %v2165 = vsub.f32 %v865, %v2164
      %v2166 = vand.u32 %v2165, 4294901760
      %2167 = vmatpush.msra.mxu0 %v2166
      %v2168 = vand.u32 %v864, 4294901760
      %v2169 = vsub.f32 %v864, %v2168
      %v2170 = vand.u32 %v2169, 4294901760
      %2171 = vmatpush.msra.mxu0 %v2170
      %v2172 = vand.u32 %v863, 4294901760
      %v2173 = vsub.f32 %v863, %v2172
      %v2174 = vand.u32 %v2173, 4294901760
      %2175 = vmatpush.msra.mxu0 %v2174
      %v2176 = vand.u32 %v862, 4294901760
      %v2177 = vsub.f32 %v862, %v2176
      %v2178 = vand.u32 %v2177, 4294901760
      %2179 = vmatpush.msra.mxu0 %v2178
      %v2180 = vand.u32 %v861, 4294901760
      %v2181 = vsub.f32 %v861, %v2180
      %v2182 = vand.u32 %v2181, 4294901760
      %2183 = vmatpush.msra.mxu0 %v2182
      %v2184 = vand.u32 %v860, 4294901760
      %v2185 = vsub.f32 %v860, %v2184
      %v2186 = vand.u32 %v2185, 4294901760
      %2187 = vmatpush.msra.mxu0 %v2186
      %v2188 = vand.u32 %v859, 4294901760
      %v2189 = vsub.f32 %v859, %v2188
      %v2190 = vand.u32 %v2189, 4294901760
      %2191 = vmatpush.msra.mxu0 %v2190
      %v2192 = vand.u32 %v858, 4294901760
      %v2193 = vsub.f32 %v858, %v2192
      %v2194 = vand.u32 %v2193, 4294901760
      %2195 = vmatpush.msra.mxu0 %v2194
      %v2196 = vand.u32 %v841, 4294901760
      %2197 = vmatmul.f32.gmra.mxu0 %v2196
      %v2198 = vpop.f32.mrf.mxu0
      %v2199 = vadd.f32 %v2130, %v2198
      %2200 = vdwg.mxu0
      %v2201 = vand.u32 %v873, 4294901760
      %2202 = vmatpush.msra.mxu0 %v2201
      %v2203 = vand.u32 %v872, 4294901760
      %2204 = vmatpush.msra.mxu0 %v2203
      %v2205 = vand.u32 %v871, 4294901760
      %2206 = vmatpush.msra.mxu0 %v2205
      %v2207 = vand.u32 %v870, 4294901760
      %2208 = vmatpush.msra.mxu0 %v2207
      %v2209 = vand.u32 %v869, 4294901760
      %2210 = vmatpush.msra.mxu0 %v2209
      %v2211 = vand.u32 %v868, 4294901760
      %2212 = vmatpush.msra.mxu0 %v2211
      %v2213 = vand.u32 %v867, 4294901760
      %2214 = vmatpush.msra.mxu0 %v2213
      %v2215 = vand.u32 %v866, 4294901760
      %2216 = vmatpush.msra.mxu0 %v2215
      %v2217 = vand.u32 %v865, 4294901760
      %2218 = vmatpush.msra.mxu0 %v2217
      %v2219 = vand.u32 %v864, 4294901760
      %2220 = vmatpush.msra.mxu0 %v2219
      %v2221 = vand.u32 %v863, 4294901760
      %2222 = vmatpush.msra.mxu0 %v2221
      %v2223 = vand.u32 %v862, 4294901760
      %2224 = vmatpush.msra.mxu0 %v2223
      %v2225 = vand.u32 %v861, 4294901760
      %2226 = vmatpush.msra.mxu0 %v2225
      %v2227 = vand.u32 %v860, 4294901760
      %2228 = vmatpush.msra.mxu0 %v2227
      %v2229 = vand.u32 %v859, 4294901760
      %2230 = vmatpush.msra.mxu0 %v2229
      %v2231 = vand.u32 %v858, 4294901760
      %2232 = vmatpush.msra.mxu0 %v2231
      %v2233 = vand.u32 %v841, 4294901760
      %2234 = vmatmul.f32.gmra.mxu0 %v2233
      %v2235 = vpop.f32.mrf.mxu0
      %v2236 = vadd.f32 %v2199, %v2235
      %2237 = vdwg.mxu0
      %v2238 = vmul.f32 %v1554, 0.0009765625
      %v2239 = vmul.f32 %v2236, 0.0009765625
      %v2240 = vmul.f32 %v2238, %v2238
      %v2241 = vsub.f32 %v2239, %v2240
      %v2242 = vadd.f32 %v2241, 1e-05
      %v2243 = vrsqrt.pop %v2242
      %v2244 = vmul.f32 %v2243, %v2242
      %v2245 = vmul.f32 %v2244, %v2243
      %v2246 = vmul.f32 0.5, %v2245
      %v2247 = vsub.f32 1.5, %v2246
      %v2248 = vmul.f32 %v2243, %v2247
      %vm2249 = vweird.f32 %v2242
      %vm2250 = vweird.f32 %v2243
      %vm2251 = vmor %vm2249, %vm2250
      %v2252 = vsel %vm2251, %v2243, %v2248
      %v2253 = vld [vmem:[%s6] sm:$0xff]
      %v2254 = vld [vmem:[%s6 + $0x8] sm:$0xff]
      %vm2255 = vcmask 64512
      %v2257 = vsel %vm2255, %v2238, 0
      %2259 = vmatpush.msra.mxu0 0.0
      %2260 = vmatpush.msra.mxu0 0.0
      %2261 = vmatpush.msra.mxu0 0.0
      %2262 = vmatpush.msra.mxu0 0.0
      %2263 = vmatpush.msra.mxu0 0.0
      %2264 = vmatpush.msra.mxu0 0.0
      %2265 = vmatpush.msra.mxu0 0.0
      %2266 = vmatpush.msra.mxu0 0.0
      %2267 = vmatpush.msra.mxu0 0.0
      %2268 = vmatpush.msra.mxu0 0.0
      %2269 = vmatpush.msra.mxu0 0.0
      %2270 = vmatpush.msra.mxu0 0.0
      %2271 = vmatpush.msra.mxu0 0.0
      %2272 = vmatpush.msra.mxu0 0.0
      %2273 = vmatpush.msra.mxu0 0.0
      %v2274 = vand.u32 %v2253, 4294901760
      %2275 = vmatpush.msra.mxu0 %v2274
      %v2276 = vand.u32 %v2257, 4294901760
      %v2277 = vsub.f32 %v2257, %v2276
      %v2278 = vand.u32 %v2277, 4294901760
      %v2279 = vsub.f32 %v2277, %v2278
      %v2280 = vand.u32 %v2279, 4294901760
      %2281 = vmatmul.f32.gmra.mxu0 %v2280
      %v2282 = vpop.f32.mrf.mxu0
      %v2283 = vadd.f32 0.0, %v2282
      %2284 = vdwg.mxu0
      %2285 = vmatpush.msra.mxu0 0.0
      %2286 = vmatpush.msra.mxu0 0.0
      %2287 = vmatpush.msra.mxu0 0.0
      %2288 = vmatpush.msra.mxu0 0.0
      %2289 = vmatpush.msra.mxu0 0.0
      %2290 = vmatpush.msra.mxu0 0.0
      %2291 = vmatpush.msra.mxu0 0.0
      %2292 = vmatpush.msra.mxu0 0.0
      %2293 = vmatpush.msra.mxu0 0.0
      %2294 = vmatpush.msra.mxu0 0.0
      %2295 = vmatpush.msra.mxu0 0.0
      %2296 = vmatpush.msra.mxu0 0.0
      %2297 = vmatpush.msra.mxu0 0.0
      %2298 = vmatpush.msra.mxu0 0.0
      %2299 = vmatpush.msra.mxu0 0.0
      %v2300 = vand.u32 %v2253, 4294901760
      %v2301 = vsub.f32 %v2253, %v2300
      %v2302 = vand.u32 %v2301, 4294901760
      %v2303 = vsub.f32 %v2301, %v2302
      %v2304 = vand.u32 %v2303, 4294901760
      %2305 = vmatpush.msra.mxu0 %v2304
      %v2306 = vand.u32 %v2257, 4294901760
      %2307 = vmatmul.f32.gmra.mxu0 %v2306
      %v2308 = vpop.f32.mrf.mxu0
      %v2309 = vadd.f32 %v2283, %v2308
      %2310 = vdwg.mxu0
      %2311 = vmatpush.msra.mxu0 0.0
      %2312 = vmatpush.msra.mxu0 0.0
      %2313 = vmatpush.msra.mxu0 0.0
      %2314 = vmatpush.msra.mxu0 0.0
      %2315 = vmatpush.msra.mxu0 0.0
      %2316 = vmatpush.msra.mxu0 0.0
      %2317 = vmatpush.msra.mxu0 0.0
      %2318 = vmatpush.msra.mxu0 0.0
      %2319 = vmatpush.msra.mxu0 0.0
      %2320 = vmatpush.msra.mxu0 0.0
      %2321 = vmatpush.msra.mxu0 0.0
      %2322 = vmatpush.msra.mxu0 0.0
      %2323 = vmatpush.msra.mxu0 0.0
      %2324 = vmatpush.msra.mxu0 0.0
      %2325 = vmatpush.msra.mxu0 0.0
      %v2326 = vand.u32 %v2253, 4294901760
      %v2327 = vsub.f32 %v2253, %v2326
      %2328 = vmatpush.msra.mxu0 %v2327
      %v2329 = vand.u32 %v2257, 4294901760
      %v2330 = vsub.f32 %v2257, %v2329
      %2331 = vmatmul.f32.gmra.mxu0 %v2330
      %v2332 = vpop.f32.mrf.mxu0
      %v2333 = vadd.f32 %v2309, %v2332
      %2334 = vdwg.mxu0
      %2335 = vmatpush.msra.mxu0 0.0
      %2336 = vmatpush.msra.mxu0 0.0
      %2337 = vmatpush.msra.mxu0 0.0
      %2338 = vmatpush.msra.mxu0 0.0
      %2339 = vmatpush.msra.mxu0 0.0
      %2340 = vmatpush.msra.mxu0 0.0
      %2341 = vmatpush.msra.mxu0 0.0
      %2342 = vmatpush.msra.mxu0 0.0
      %2343 = vmatpush.msra.mxu0 0.0
      %2344 = vmatpush.msra.mxu0 0.0
      %2345 = vmatpush.msra.mxu0 0.0
      %2346 = vmatpush.msra.mxu0 0.0
      %2347 = vmatpush.msra.mxu0 0.0
      %2348 = vmatpush.msra.mxu0 0.0
      %2349 = vmatpush.msra.mxu0 0.0
      %v2350 = vand.u32 %v2253, 4294901760
      %2351 = vmatpush.msra.mxu0 %v2350
      %v2352 = vand.u32 %v2257, 4294901760
      %v2353 = vsub.f32 %v2257, %v2352
      %v2354 = vand.u32 %v2353, 4294901760
      %2355 = vmatmul.f32.gmra.mxu0 %v2354
      %v2356 = vpop.f32.mrf.mxu0
      %v2357 = vadd.f32 %v2333, %v2356
      %2358 = vdwg.mxu0
      %2359 = vmatpush.msra.mxu0 0.0
      %2360 = vmatpush.msra.mxu0 0.0
      %2361 = vmatpush.msra.mxu0 0.0
      %2362 = vmatpush.msra.mxu0 0.0
      %2363 = vmatpush.msra.mxu0 0.0
      %2364 = vmatpush.msra.mxu0 0.0
      %2365 = vmatpush.msra.mxu0 0.0
      %2366 = vmatpush.msra.mxu0 0.0
      %2367 = vmatpush.msra.mxu0 0.0
      %2368 = vmatpush.msra.mxu0 0.0
      %2369 = vmatpush.msra.mxu0 0.0
      %2370 = vmatpush.msra.mxu0 0.0
      %2371 = vmatpush.msra.mxu0 0.0
      %2372 = vmatpush.msra.mxu0 0.0
      %2373 = vmatpush.msra.mxu0 0.0
      %v2374 = vand.u32 %v2253, 4294901760
      %v2375 = vsub.f32 %v2253, %v2374
      %v2376 = vand.u32 %v2375, 4294901760
      %2377 = vmatpush.msra.mxu0 %v2376
      %v2378 = vand.u32 %v2257, 4294901760
      %2379 = vmatmul.f32.gmra.mxu0 %v2378
      %v2380 = vpop.f32.mrf.mxu0
      %v2381 = vadd.f32 %v2357, %v2380
      %2382 = vdwg.mxu0
      %2383 = vmatpush.msra.mxu0 0.0
      %2384 = vmatpush.msra.mxu0 0.0
      %2385 = vmatpush.msra.mxu0 0.0
      %2386 = vmatpush.msra.mxu0 0.0
      %2387 = vmatpush.msra.mxu0 0.0
      %2388 = vmatpush.msra.mxu0 0.0
      %2389 = vmatpush.msra.mxu0 0.0
      %2390 = vmatpush.msra.mxu0 0.0
      %2391 = vmatpush.msra.mxu0 0.0
      %2392 = vmatpush.msra.mxu0 0.0
      %2393 = vmatpush.msra.mxu0 0.0
      %2394 = vmatpush.msra.mxu0 0.0
      %2395 = vmatpush.msra.mxu0 0.0
      %2396 = vmatpush.msra.mxu0 0.0
      %2397 = vmatpush.msra.mxu0 0.0
      %v2398 = vand.u32 %v2253, 4294901760
      %2399 = vmatpush.msra.mxu0 %v2398
      %v2400 = vand.u32 %v2257, 4294901760
      %2401 = vmatmul.f32.gmra.mxu0 %v2400
      %v2402 = vpop.f32.mrf.mxu0
      %v2403 = vadd.f32 %v2381, %v2402
      %2404 = vdwg.mxu0
      %2405 = vmatpush.msra.mxu0 0.0
      %2406 = vmatpush.msra.mxu0 0.0
      %2407 = vmatpush.msra.mxu0 0.0
      %2408 = vmatpush.msra.mxu0 0.0
      %2409 = vmatpush.msra.mxu0 0.0
      %2410 = vmatpush.msra.mxu0 0.0
      %2411 = vmatpush.msra.mxu0 0.0
      %2412 = vmatpush.msra.mxu0 0.0
      %2413 = vmatpush.msra.mxu0 0.0
      %2414 = vmatpush.msra.mxu0 0.0
      %2415 = vmatpush.msra.mxu0 0.0
      %2416 = vmatpush.msra.mxu0 0.0
      %2417 = vmatpush.msra.mxu0 0.0
      %2418 = vmatpush.msra.mxu0 0.0
      %2419 = vmatpush.msra.mxu0 0.0
      %v2420 = vand.u32 %v2254, 4294901760
      %2421 = vmatpush.msra.mxu0 %v2420
      %v2422 = vand.u32 %v2257, 4294901760
      %v2423 = vsub.f32 %v2257, %v2422
      %v2424 = vand.u32 %v2423, 4294901760
      %v2425 = vsub.f32 %v2423, %v2424
      %v2426 = vand.u32 %v2425, 4294901760
      %2427 = vmatmul.f32.gmra.mxu0 %v2426
      %v2428 = vpop.f32.mrf.mxu0
      %v2429 = vadd.f32 0.0, %v2428
      %2430 = vdwg.mxu0
      %2431 = vmatpush.msra.mxu0 0.0
      %2432 = vmatpush.msra.mxu0 0.0
      %2433 = vmatpush.msra.mxu0 0.0
      %2434 = vmatpush.msra.mxu0 0.0
      %2435 = vmatpush.msra.mxu0 0.0
      %2436 = vmatpush.msra.mxu0 0.0
      %2437 = vmatpush.msra.mxu0 0.0
      %2438 = vmatpush.msra.mxu0 0.0
      %2439 = vmatpush.msra.mxu0 0.0
      %2440 = vmatpush.msra.mxu0 0.0
      %2441 = vmatpush.msra.mxu0 0.0
      %2442 = vmatpush.msra.mxu0 0.0
      %2443 = vmatpush.msra.mxu0 0.0
      %2444 = vmatpush.msra.mxu0 0.0
      %2445 = vmatpush.msra.mxu0 0.0
      %v2446 = vand.u32 %v2254, 4294901760
      %v2447 = vsub.f32 %v2254, %v2446
      %v2448 = vand.u32 %v2447, 4294901760
      %v2449 = vsub.f32 %v2447, %v2448
      %v2450 = vand.u32 %v2449, 4294901760
      %2451 = vmatpush.msra.mxu0 %v2450
      %v2452 = vand.u32 %v2257, 4294901760
      %2453 = vmatmul.f32.gmra.mxu0 %v2452
      %v2454 = vpop.f32.mrf.mxu0
      %v2455 = vadd.f32 %v2429, %v2454
      %2456 = vdwg.mxu0
      %2457 = vmatpush.msra.mxu0 0.0
      %2458 = vmatpush.msra.mxu0 0.0
      %2459 = vmatpush.msra.mxu0 0.0
      %2460 = vmatpush.msra.mxu0 0.0
      %2461 = vmatpush.msra.mxu0 0.0
      %2462 = vmatpush.msra.mxu0 0.0
      %2463 = vmatpush.msra.mxu0 0.0
      %2464 = vmatpush.msra.mxu0 0.0
      %2465 = vmatpush.msra.mxu0 0.0
      %2466 = vmatpush.msra.mxu0 0.0
      %2467 = vmatpush.msra.mxu0 0.0
      %2468 = vmatpush.msra.mxu0 0.0
      %2469 = vmatpush.msra.mxu0 0.0
      %2470 = vmatpush.msra.mxu0 0.0
      %2471 = vmatpush.msra.mxu0 0.0
      %v2472 = vand.u32 %v2254, 4294901760
      %v2473 = vsub.f32 %v2254, %v2472
      %2474 = vmatpush.msra.mxu0 %v2473
      %v2475 = vand.u32 %v2257, 4294901760
      %v2476 = vsub.f32 %v2257, %v2475
      %2477 = vmatmul.f32.gmra.mxu0 %v2476
      %v2478 = vpop.f32.mrf.mxu0
      %v2479 = vadd.f32 %v2455, %v2478
      %2480 = vdwg.mxu0
      %2481 = vmatpush.msra.mxu0 0.0
      %2482 = vmatpush.msra.mxu0 0.0
      %2483 = vmatpush.msra.mxu0 0.0
      %2484 = vmatpush.msra.mxu0 0.0
      %2485 = vmatpush.msra.mxu0 0.0
      %2486 = vmatpush.msra.mxu0 0.0
      %2487 = vmatpush.msra.mxu0 0.0
      %2488 = vmatpush.msra.mxu0 0.0
      %2489 = vmatpush.msra.mxu0 0.0
      %2490 = vmatpush.msra.mxu0 0.0
      %2491 = vmatpush.msra.mxu0 0.0
      %2492 = vmatpush.msra.mxu0 0.0
      %2493 = vmatpush.msra.mxu0 0.0
      %2494 = vmatpush.msra.mxu0 0.0
      %2495 = vmatpush.msra.mxu0 0.0
      %v2496 = vand.u32 %v2254, 4294901760
      %2497 = vmatpush.msra.mxu0 %v2496
      %v2498 = vand.u32 %v2257, 4294901760
      %v2499 = vsub.f32 %v2257, %v2498
      %v2500 = vand.u32 %v2499, 4294901760
      %2501 = vmatmul.f32.gmra.mxu0 %v2500
      %v2502 = vpop.f32.mrf.mxu0
      %v2503 = vadd.f32 %v2479, %v2502
      %2504 = vdwg.mxu0
      %2505 = vmatpush.msra.mxu0 0.0
      %2506 = vmatpush.msra.mxu0 0.0
      %2507 = vmatpush.msra.mxu0 0.0
      %2508 = vmatpush.msra.mxu0 0.0
      %2509 = vmatpush.msra.mxu0 0.0
      %2510 = vmatpush.msra.mxu0 0.0
      %2511 = vmatpush.msra.mxu0 0.0
      %2512 = vmatpush.msra.mxu0 0.0
      %2513 = vmatpush.msra.mxu0 0.0
      %2514 = vmatpush.msra.mxu0 0.0
      %2515 = vmatpush.msra.mxu0 0.0
      %2516 = vmatpush.msra.mxu0 0.0
      %2517 = vmatpush.msra.mxu0 0.0
      %2518 = vmatpush.msra.mxu0 0.0
      %2519 = vmatpush.msra.mxu0 0.0
      %v2520 = vand.u32 %v2254, 4294901760
      %v2521 = vsub.f32 %v2254, %v2520
      %v2522 = vand.u32 %v2521, 4294901760
      %2523 = vmatpush.msra.mxu0 %v2522
      %v2524 = vand.u32 %v2257, 4294901760
      %2525 = vmatmul.f32.gmra.mxu0 %v2524
      %v2526 = vpop.f32.mrf.mxu0
      %v2527 = vadd.f32 %v2503, %v2526
      %2528 = vdwg.mxu0
      %2529 = vmatpush.msra.mxu0 0.0
      %2530 = vmatpush.msra.mxu0 0.0
      %2531 = vmatpush.msra.mxu0 0.0
      %2532 = vmatpush.msra.mxu0 0.0
      %2533 = vmatpush.msra.mxu0 0.0
      %2534 = vmatpush.msra.mxu0 0.0
      %2535 = vmatpush.msra.mxu0 0.0
      %2536 = vmatpush.msra.mxu0 0.0
      %2537 = vmatpush.msra.mxu0 0.0
      %2538 = vmatpush.msra.mxu0 0.0
      %2539 = vmatpush.msra.mxu0 0.0
      %2540 = vmatpush.msra.mxu0 0.0
      %2541 = vmatpush.msra.mxu0 0.0
      %2542 = vmatpush.msra.mxu0 0.0
      %2543 = vmatpush.msra.mxu0 0.0
      %v2544 = vand.u32 %v2254, 4294901760
      %2545 = vmatpush.msra.mxu0 %v2544
      %v2546 = vand.u32 %v2257, 4294901760
      %2547 = vmatmul.f32.gmra.mxu0 %v2546
      %v2548 = vpop.f32.mrf.mxu0
      %v2549 = vadd.f32 %v2527, %v2548
      %2550 = vdwg.mxu0
      %v2552 = vsel %vm2255, %v2252, 0
      %2554 = vmatpush.msra.mxu0 0.0
      %2555 = vmatpush.msra.mxu0 0.0
      %2556 = vmatpush.msra.mxu0 0.0
      %2557 = vmatpush.msra.mxu0 0.0
      %2558 = vmatpush.msra.mxu0 0.0
      %2559 = vmatpush.msra.mxu0 0.0
      %2560 = vmatpush.msra.mxu0 0.0
      %2561 = vmatpush.msra.mxu0 0.0
      %2562 = vmatpush.msra.mxu0 0.0
      %2563 = vmatpush.msra.mxu0 0.0
      %2564 = vmatpush.msra.mxu0 0.0
      %2565 = vmatpush.msra.mxu0 0.0
      %2566 = vmatpush.msra.mxu0 0.0
      %2567 = vmatpush.msra.mxu0 0.0
      %2568 = vmatpush.msra.mxu0 0.0
      %v2569 = vand.u32 %v2253, 4294901760
      %2570 = vmatpush.msra.mxu0 %v2569
      %v2571 = vand.u32 %v2552, 4294901760
      %v2572 = vsub.f32 %v2552, %v2571
      %v2573 = vand.u32 %v2572, 4294901760
      %v2574 = vsub.f32 %v2572, %v2573
      %v2575 = vand.u32 %v2574, 4294901760
      %2576 = vmatmul.f32.gmra.mxu0 %v2575
      %v2577 = vpop.f32.mrf.mxu0
      %v2578 = vadd.f32 0.0, %v2577
      %2579 = vdwg.mxu0
      %2580 = vmatpush.msra.mxu0 0.0
      %2581 = vmatpush.msra.mxu0 0.0
      %2582 = vmatpush.msra.mxu0 0.0
      %2583 = vmatpush.msra.mxu0 0.0
      %2584 = vmatpush.msra.mxu0 0.0
      %2585 = vmatpush.msra.mxu0 0.0
      %2586 = vmatpush.msra.mxu0 0.0
      %2587 = vmatpush.msra.mxu0 0.0
      %2588 = vmatpush.msra.mxu0 0.0
      %2589 = vmatpush.msra.mxu0 0.0
      %2590 = vmatpush.msra.mxu0 0.0
      %2591 = vmatpush.msra.mxu0 0.0
      %2592 = vmatpush.msra.mxu0 0.0
      %2593 = vmatpush.msra.mxu0 0.0
      %2594 = vmatpush.msra.mxu0 0.0
      %v2595 = vand.u32 %v2253, 4294901760
      %v2596 = vsub.f32 %v2253, %v2595
      %v2597 = vand.u32 %v2596, 4294901760
      %v2598 = vsub.f32 %v2596, %v2597
      %v2599 = vand.u32 %v2598, 4294901760
      %2600 = vmatpush.msra.mxu0 %v2599
      %v2601 = vand.u32 %v2552, 4294901760
      %2602 = vmatmul.f32.gmra.mxu0 %v2601
      %v2603 = vpop.f32.mrf.mxu0
      %v2604 = vadd.f32 %v2578, %v2603
      %2605 = vdwg.mxu0
      %2606 = vmatpush.msra.mxu0 0.0
      %2607 = vmatpush.msra.mxu0 0.0
      %2608 = vmatpush.msra.mxu0 0.0
      %2609 = vmatpush.msra.mxu0 0.0
      %2610 = vmatpush.msra.mxu0 0.0
      %2611 = vmatpush.msra.mxu0 0.0
      %2612 = vmatpush.msra.mxu0 0.0
      %2613 = vmatpush.msra.mxu0 0.0
      %2614 = vmatpush.msra.mxu0 0.0
      %2615 = vmatpush.msra.mxu0 0.0
      %2616 = vmatpush.msra.mxu0 0.0
      %2617 = vmatpush.msra.mxu0 0.0
      %2618 = vmatpush.msra.mxu0 0.0
      %2619 = vmatpush.msra.mxu0 0.0
      %2620 = vmatpush.msra.mxu0 0.0
      %v2621 = vand.u32 %v2253, 4294901760
      %v2622 = vsub.f32 %v2253, %v2621
      %2623 = vmatpush.msra.mxu0 %v2622
      %v2624 = vand.u32 %v2552, 4294901760
      %v2625 = vsub.f32 %v2552, %v2624
      %2626 = vmatmul.f32.gmra.mxu0 %v2625
      %v2627 = vpop.f32.mrf.mxu0
      %v2628 = vadd.f32 %v2604, %v2627
      %2629 = vdwg.mxu0
      %2630 = vmatpush.msra.mxu0 0.0
      %2631 = vmatpush.msra.mxu0 0.0
      %2632 = vmatpush.msra.mxu0 0.0
      %2633 = vmatpush.msra.mxu0 0.0
      %2634 = vmatpush.msra.mxu0 0.0
      %2635 = vmatpush.msra.mxu0 0.0
      %2636 = vmatpush.msra.mxu0 0.0
      %2637 = vmatpush.msra.mxu0 0.0
      %2638 = vmatpush.msra.mxu0 0.0
      %2639 = vmatpush.msra.mxu0 0.0
      %2640 = vmatpush.msra.mxu0 0.0
      %2641 = vmatpush.msra.mxu0 0.0
      %2642 = vmatpush.msra.mxu0 0.0
      %2643 = vmatpush.msra.mxu0 0.0
      %2644 = vmatpush.msra.mxu0 0.0
      %v2645 = vand.u32 %v2253, 4294901760
      %2646 = vmatpush.msra.mxu0 %v2645
      %v2647 = vand.u32 %v2552, 4294901760
      %v2648 = vsub.f32 %v2552, %v2647
      %v2649 = vand.u32 %v2648, 4294901760
      %2650 = vmatmul.f32.gmra.mxu0 %v2649
      %v2651 = vpop.f32.mrf.mxu0
      %v2652 = vadd.f32 %v2628, %v2651
      %2653 = vdwg.mxu0
      %2654 = vmatpush.msra.mxu0 0.0
      %2655 = vmatpush.msra.mxu0 0.0
      %2656 = vmatpush.msra.mxu0 0.0
      %2657 = vmatpush.msra.mxu0 0.0
      %2658 = vmatpush.msra.mxu0 0.0
      %2659 = vmatpush.msra.mxu0 0.0
      %2660 = vmatpush.msra.mxu0 0.0
      %2661 = vmatpush.msra.mxu0 0.0
      %2662 = vmatpush.msra.mxu0 0.0
      %2663 = vmatpush.msra.mxu0 0.0
      %2664 = vmatpush.msra.mxu0 0.0
      %2665 = vmatpush.msra.mxu0 0.0
      %2666 = vmatpush.msra.mxu0 0.0
      %2667 = vmatpush.msra.mxu0 0.0
      %2668 = vmatpush.msra.mxu0 0.0
      %v2669 = vand.u32 %v2253, 4294901760
      %v2670 = vsub.f32 %v2253, %v2669
      %v2671 = vand.u32 %v2670, 4294901760
      %2672 = vmatpush.msra.mxu0 %v2671
      %v2673 = vand.u32 %v2552, 4294901760
      %2674 = vmatmul.f32.gmra.mxu0 %v2673
      %v2675 = vpop.f32.mrf.mxu0
      %v2676 = vadd.f32 %v2652, %v2675
      %2677 = vdwg.mxu0
      %2678 = vmatpush.msra.mxu0 0.0
      %2679 = vmatpush.msra.mxu0 0.0
      %2680 = vmatpush.msra.mxu0 0.0
      %2681 = vmatpush.msra.mxu0 0.0
      %2682 = vmatpush.msra.mxu0 0.0
      %2683 = vmatpush.msra.mxu0 0.0
      %2684 = vmatpush.msra.mxu0 0.0
      %2685 = vmatpush.msra.mxu0 0.0
      %2686 = vmatpush.msra.mxu0 0.0
      %2687 = vmatpush.msra.mxu0 0.0
      %2688 = vmatpush.msra.mxu0 0.0
      %2689 = vmatpush.msra.mxu0 0.0
      %2690 = vmatpush.msra.mxu0 0.0
      %2691 = vmatpush.msra.mxu0 0.0
      %2692 = vmatpush.msra.mxu0 0.0
      %v2693 = vand.u32 %v2253, 4294901760
      %2694 = vmatpush.msra.mxu0 %v2693
      %v2695 = vand.u32 %v2552, 4294901760
      %2696 = vmatmul.f32.gmra.mxu0 %v2695
      %v2697 = vpop.f32.mrf.mxu0
      %v2698 = vadd.f32 %v2676, %v2697
      %2699 = vdwg.mxu0
      %2700 = vmatpush.msra.mxu0 0.0
      %2701 = vmatpush.msra.mxu0 0.0
      %2702 = vmatpush.msra.mxu0 0.0
      %2703 = vmatpush.msra.mxu0 0.0
      %2704 = vmatpush.msra.mxu0 0.0
      %2705 = vmatpush.msra.mxu0 0.0
      %2706 = vmatpush.msra.mxu0 0.0
      %2707 = vmatpush.msra.mxu0 0.0
      %2708 = vmatpush.msra.mxu0 0.0
      %2709 = vmatpush.msra.mxu0 0.0
      %2710 = vmatpush.msra.mxu0 0.0
      %2711 = vmatpush.msra.mxu0 0.0
      %2712 = vmatpush.msra.mxu0 0.0
      %2713 = vmatpush.msra.mxu0 0.0
      %2714 = vmatpush.msra.mxu0 0.0
      %v2715 = vand.u32 %v2254, 4294901760
      %2716 = vmatpush.msra.mxu0 %v2715
      %v2717 = vand.u32 %v2552, 4294901760
      %v2718 = vsub.f32 %v2552, %v2717
      %v2719 = vand.u32 %v2718, 4294901760
      %v2720 = vsub.f32 %v2718, %v2719
      %v2721 = vand.u32 %v2720, 4294901760
      %2722 = vmatmul.f32.gmra.mxu0 %v2721
      %v2723 = vpop.f32.mrf.mxu0
      %v2724 = vadd.f32 0.0, %v2723
      %2725 = vdwg.mxu0
      %2726 = vmatpush.msra.mxu0 0.0
      %2727 = vmatpush.msra.mxu0 0.0
      %2728 = vmatpush.msra.mxu0 0.0
      %2729 = vmatpush.msra.mxu0 0.0
      %2730 = vmatpush.msra.mxu0 0.0
      %2731 = vmatpush.msra.mxu0 0.0
      %2732 = vmatpush.msra.mxu0 0.0
      %2733 = vmatpush.msra.mxu0 0.0
      %2734 = vmatpush.msra.mxu0 0.0
      %2735 = vmatpush.msra.mxu0 0.0
      %2736 = vmatpush.msra.mxu0 0.0
      %2737 = vmatpush.msra.mxu0 0.0
      %2738 = vmatpush.msra.mxu0 0.0
      %2739 = vmatpush.msra.mxu0 0.0
      %2740 = vmatpush.msra.mxu0 0.0
      %v2741 = vand.u32 %v2254, 4294901760
      %v2742 = vsub.f32 %v2254, %v2741
      %v2743 = vand.u32 %v2742, 4294901760
      %v2744 = vsub.f32 %v2742, %v2743
      %v2745 = vand.u32 %v2744, 4294901760
      %2746 = vmatpush.msra.mxu0 %v2745
      %v2747 = vand.u32 %v2552, 4294901760
      %2748 = vmatmul.f32.gmra.mxu0 %v2747
      %v2749 = vpop.f32.mrf.mxu0
      %v2750 = vadd.f32 %v2724, %v2749
      %2751 = vdwg.mxu0
      %2752 = vmatpush.msra.mxu0 0.0
      %2753 = vmatpush.msra.mxu0 0.0
      %2754 = vmatpush.msra.mxu0 0.0
      %2755 = vmatpush.msra.mxu0 0.0
      %2756 = vmatpush.msra.mxu0 0.0
      %2757 = vmatpush.msra.mxu0 0.0
      %2758 = vmatpush.msra.mxu0 0.0
      %2759 = vmatpush.msra.mxu0 0.0
      %2760 = vmatpush.msra.mxu0 0.0
      %2761 = vmatpush.msra.mxu0 0.0
      %2762 = vmatpush.msra.mxu0 0.0
      %2763 = vmatpush.msra.mxu0 0.0
      %2764 = vmatpush.msra.mxu0 0.0
      %2765 = vmatpush.msra.mxu0 0.0
      %2766 = vmatpush.msra.mxu0 0.0
      %v2767 = vand.u32 %v2254, 4294901760
      %v2768 = vsub.f32 %v2254, %v2767
      %2769 = vmatpush.msra.mxu0 %v2768
      %v2770 = vand.u32 %v2552, 4294901760
      %v2771 = vsub.f32 %v2552, %v2770
      %2772 = vmatmul.f32.gmra.mxu0 %v2771
      %v2773 = vpop.f32.mrf.mxu0
      %v2774 = vadd.f32 %v2750, %v2773
      %2775 = vdwg.mxu0
      %2776 = vmatpush.msra.mxu0 0.0
      %2777 = vmatpush.msra.mxu0 0.0
      %2778 = vmatpush.msra.mxu0 0.0
      %2779 = vmatpush.msra.mxu0 0.0
      %2780 = vmatpush.msra.mxu0 0.0
      %2781 = vmatpush.msra.mxu0 0.0
      %2782 = vmatpush.msra.mxu0 0.0
      %2783 = vmatpush.msra.mxu0 0.0
      %2784 = vmatpush.msra.mxu0 0.0
      %2785 = vmatpush.msra.mxu0 0.0
      %2786 = vmatpush.msra.mxu0 0.0
      %2787 = vmatpush.msra.mxu0 0.0
      %2788 = vmatpush.msra.mxu0 0.0
      %2789 = vmatpush.msra.mxu0 0.0
      %2790 = vmatpush.msra.mxu0 0.0
      %v2791 = vand.u32 %v2254, 4294901760
      %2792 = vmatpush.msra.mxu0 %v2791
      %v2793 = vand.u32 %v2552, 4294901760
      %v2794 = vsub.f32 %v2552, %v2793
      %v2795 = vand.u32 %v2794, 4294901760
      %2796 = vmatmul.f32.gmra.mxu0 %v2795
      %v2797 = vpop.f32.mrf.mxu0
      %v2798 = vadd.f32 %v2774, %v2797
      %2799 = vdwg.mxu0
      %2800 = vmatpush.msra.mxu0 0.0
      %2801 = vmatpush.msra.mxu0 0.0
      %2802 = vmatpush.msra.mxu0 0.0
      %2803 = vmatpush.msra.mxu0 0.0
      %2804 = vmatpush.msra.mxu0 0.0
      %2805 = vmatpush.msra.mxu0 0.0
      %2806 = vmatpush.msra.mxu0 0.0
      %2807 = vmatpush.msra.mxu0 0.0
      %2808 = vmatpush.msra.mxu0 0.0
      %2809 = vmatpush.msra.mxu0 0.0
      %2810 = vmatpush.msra.mxu0 0.0
      %2811 = vmatpush.msra.mxu0 0.0
      %2812 = vmatpush.msra.mxu0 0.0
      %2813 = vmatpush.msra.mxu0 0.0
      %2814 = vmatpush.msra.mxu0 0.0
      %v2815 = vand.u32 %v2254, 4294901760
      %v2816 = vsub.f32 %v2254, %v2815
      %v2817 = vand.u32 %v2816, 4294901760
      %2818 = vmatpush.msra.mxu0 %v2817
      %v2819 = vand.u32 %v2552, 4294901760
      %2820 = vmatmul.f32.gmra.mxu0 %v2819
      %v2821 = vpop.f32.mrf.mxu0
      %v2822 = vadd.f32 %v2798, %v2821
      %2823 = vdwg.mxu0
      %2824 = vmatpush.msra.mxu0 0.0
      %2825 = vmatpush.msra.mxu0 0.0
      %2826 = vmatpush.msra.mxu0 0.0
      %2827 = vmatpush.msra.mxu0 0.0
      %2828 = vmatpush.msra.mxu0 0.0
      %2829 = vmatpush.msra.mxu0 0.0
      %2830 = vmatpush.msra.mxu0 0.0
      %2831 = vmatpush.msra.mxu0 0.0
      %2832 = vmatpush.msra.mxu0 0.0
      %2833 = vmatpush.msra.mxu0 0.0
      %2834 = vmatpush.msra.mxu0 0.0
      %2835 = vmatpush.msra.mxu0 0.0
      %2836 = vmatpush.msra.mxu0 0.0
      %2837 = vmatpush.msra.mxu0 0.0
      %2838 = vmatpush.msra.mxu0 0.0
      %v2839 = vand.u32 %v2254, 4294901760
      %2840 = vmatpush.msra.mxu0 %v2839
      %v2841 = vand.u32 %v2552, 4294901760
      %2842 = vmatmul.f32.gmra.mxu0 %v2841
      %v2843 = vpop.f32.mrf.mxu0
      %v2844 = vadd.f32 %v2822, %v2843
      %2845 = vdwg.mxu0
      %v2846 = vperm.slane %v2403, 0
      %v2847 = vperm.slane %v2549, 0
      %v2848 = vsub.f32 %v770, %v2846
      %v2849 = vsub.f32 %v789, %v2847
      %v2850 = vsub.f32 %v772, %v2846
      %v2851 = vsub.f32 %v791, %v2847
      %v2852 = vsub.f32 %v775, %v2846
      %v2853 = vsub.f32 %v794, %v2847
      %v2854 = vsub.f32 %v777, %v2846
      %v2855 = vsub.f32 %v796, %v2847
      %v2856 = vperm.slane %v2698, 0
      %v2857 = vperm.slane %v2844, 0
      %v2858 = vmul.f32 %v2848, %v2856
      %v2859 = vmul.f32 %v2849, %v2857
      %v2860 = vmul.f32 %v2850, %v2856
      %v2861 = vmul.f32 %v2851, %v2857
      %v2862 = vmul.f32 %v2852, %v2856
      %v2863 = vmul.f32 %v2853, %v2857
      %v2864 = vmul.f32 %v2854, %v2856
      %v2865 = vmul.f32 %v2855, %v2857
      %v2866 = vmax.f32 %v2858, 0.0
      %v2867 = vmax.f32 %v2859, 0.0
      %v2868 = vmax.f32 %v2860, 0.0
      %v2869 = vmax.f32 %v2861, 0.0
      %v2870 = vmax.f32 %v2862, 0.0
      %v2871 = vmax.f32 %v2863, 0.0
      %v2872 = vmax.f32 %v2864, 0.0
      %v2873 = vmax.f32 %v2865, 0.0
      %2874 = vst [vmem:[%s278] sm:$0xff] %v2866
      %2875 = vst [vmem:[%s278 + $0x8] sm:$0xff] %v2867
      %2876 = vst [vmem:[%s278 + $0x10] sm:$0xff] %v2868
      %2877 = vst [vmem:[%s278 + $0x18] sm:$0xff] %v2869
      %2878 = vst [vmem:[%s278 + $0x20] sm:$0xff] %v2870
      %2879 = vst [vmem:[%s278 + $0x28] sm:$0xff] %v2871
      %2880 = vst [vmem:[%s278 + $0x30] sm:$0xff] %v2872
      %2881 = vst [vmem:[%s278 + $0x38] sm:$0xff] %v2873
      %p2882 = scmp.lt.s32.totalorder %s18, 1
      %s2883 = scalar_select %p2882, %s18, 1
      %s2884 = smul.addr %s2883, 8
      %s2885 = smul.addr %s2884, 8
      %s2886 = scalar_lea.vmem %s7, %s2885
      // Predicated region
      $region49: #{backbone_up.1} parent=47 // pred_check
        %p2887 = pneg %p188
      $region50: #{backbone_up.1} parent=47 // pred_check_branch
        %2889 = sbr.rel (%p2887) target = $region52
      $region51: #{backbone_up.1} parent=47 // pred_region
        _
      $region52: #{backbone_up.1} parent=47 // pred_fallthru
        _
    $region48: #{backbone_up.1} parent=5 // pred_fallthru
      _
    %p2890 = scmp.le.s32.totalorder 2, %s13
    // Predicated region
    $region53: #{backbone_up.1} parent=5 // pred_check
      %p2891 = pneg %p2890
    $region54: #{backbone_up.1} parent=5 // pred_check_branch
      %2893 = sbr.rel (%p2891) target = $region56
    $region55: #{backbone_up.1} parent=5 // pred_region
      %s2894 = ssub.s32 %s13, 2
      // Predicated region
      $region57: #{backbone_up.1} parent=55 // pred_check
        %p2895 = pneg %p194
      $region58: #{backbone_up.1} parent=55 // pred_check_branch
        %2897 = sbr.rel (%p2895) target = $region60
      $region59: #{backbone_up.1} parent=55 // pred_region
        %p2898 = scmp.lt.s32.totalorder %s19, 1
        %s2899 = scalar_select %p2898, %s19, 1
        %s2900 = smul.addr %s2899, 8
        %s2901 = smul.addr %s2900, 8
        %s2902 = scalar_lea.vmem %s7, %s2901
      $region60: #{backbone_up.1} parent=55 // pred_fallthru
        _
    $region56: #{backbone_up.1} parent=5 // pred_fallthru
      _
  $region6: #{backbone_up.1} parent=0 // loop_footer
    %s17 = sadd.s32 1, %s13
  $region7: #{backbone_up.1} parent=0 // loop_footer_branch
    %12 = sbr.rel target = $region3
  $region8: #{backbone_up.1} parent=0 // loop_exit
    _

</llo_original>
